<compile_context>
chip_gen: v7x
topology: tpu7x:2x2x1
jax: 0.10.0
libtpu: 0.0.40
codegen_flags: <defaults>
</compile_context>

<pallas_src>
import math

import jax
import jax.numpy as jnp
from jax.experimental import pallas as pl
from jax.experimental.pallas import tpu as pltpu

_LEAKY_SLOPE = 0.01   # nn.LeakyReLU default
_ROUND_BIAS = 1.49


def _leaky_relu(v):
    return jnp.where(v >= 0, v, _LEAKY_SLOPE * v)


def _qtp_kernel(x_ref, vec_ref, noise_ref, w1_ref, w23_ref, b123_ref,
                w4_ref, poolw_ref, poolv_ref, scalar_ref, out_ref):
    """One grid step == one stream.  Shapes (leading size-1 stream axis elided):
       x      (B, C, N)     f32   raw stream
       vec    (4, NP)       f32   [mean | 1/var | b4 | pb3]  (rows 0,1 valid on :N)
       noise  (B, NP)       f32   uniform(-0.5, 0.5) rounding noise
       w1     (N, H)        bf16
       w23    (2, H, H)     bf16  [w2 | w3]
       b123   (3, H)        f32   [b1 | b2 | b3]
       w4     (H, NP)       f32   zero-padded beyond N
       poolw  (2, BC, BC)   f32   [kron(I_B, pw1) | kron(I_B, pw2)]
       poolv  (3, BC, NP)   f32   [pb1 | pb2 | pw3] pre-broadcast along lanes
       scalar (1,)  SMEM    f32   inference_scalar
       out    (B, NP)       f32
    """
    _, B, C, N = x_ref.shape
    BC = B * C
    NP = out_ref.shape[-1]

    vec = vec_ref[0]                                   # (4, NP)
    b123 = b123_ref[0]                                 # (3, H)

    # TODO(synk): only the c_ == 1 normalization branch (mean/var of shape [N])
    # is implemented; the grouped (c_ != 1) branch is not exercised by defaults.
    x = (x_ref[0].reshape(BC, N) - vec[0:1, :N]) * vec[1:2, :N]

    # ---- per-stream 4-layer MLP over N: all B*C rows in one matmul chain ----
    h = _leaky_relu(jnp.dot(x.astype(jnp.bfloat16), w1_ref[0],
                            preferred_element_type=jnp.float32) + b123[0:1, :])
    h = _leaky_relu(jnp.dot(h.astype(jnp.bfloat16), w23_ref[0, 0],
                            preferred_element_type=jnp.float32) + b123[1:2, :])
    h = _leaky_relu(jnp.dot(h.astype(jnp.bfloat16), w23_ref[0, 1],
                            preferred_element_type=jnp.float32) + b123[2:3, :])
    # last per-stream layer kept in f32 (accuracy near the +-0.5 rounding band)
    h = jnp.maximum(jnp.dot(h, w4_ref[0],
                            preferred_element_type=jnp.float32) + vec[2:3, :],
                    0.0)                                              # (BC, NP)

    # ---- pooling MLP over C, vectorized over batch via block-diag weights ----
    q = _leaky_relu(jnp.dot(poolw_ref[0, 0], h,
                            preferred_element_type=jnp.float32) + poolv_ref[0, 0])
    q = _leaky_relu(jnp.dot(poolw_ref[0, 1], q,
                            preferred_element_type=jnp.float32) + poolv_ref[0, 1])
    # final (1, C) layer: pre-broadcast multiply + segmented sublane reduce
    t = jnp.sum((poolv_ref[0, 2] * q).reshape(B, C, NP), axis=1)      # (B, NP)
    table = jnp.maximum(t + vec[3:4, :], 0.0)

    # +bias, *inference_scalar, noise_round -> one unmasked full-lane store.
    # TODO(synk): noise could instead be drawn in-kernel with pltpu.prng_seed +
    # pltpu.prng_random_bits to drop one (B, NP) input DMA per stream.
    out_ref[0] = (table + _ROUND_BIAS) * scalar_ref[0] + noise_ref[0]


def _pack_stream(p, B, C, N, NP):
    """Pack one stream's parameters into the kernel's fused/padded layout."""
    f32, bf = jnp.float32, jnp.bfloat16
    H = p["w1"].shape[1]

    def row(a):                      # (*, N) -> (1, NP) zero-padded f32 row
        a = jnp.asarray(a, f32).reshape(1, -1)
        return jnp.pad(a, ((0, 0), (0, NP - a.shape[1])))

    vec = jnp.concatenate(
        [row(p["mean"]), row(1.0 / p["var"]), row(p["b4"]),
         jnp.tile(jnp.asarray(p["pb3"], f32).reshape(1, 1), (1, NP))], axis=0)  # (4, NP)

    w1 = p["w1"].astype(bf)                                           # (N, H)
    w23 = jnp.stack([p["w2"], p["w3"]]).astype(bf)                    # (2, H, H)
    b123 = jnp.concatenate([jnp.reshape(p["b1"], (1, H)),
                            jnp.reshape(p["b2"], (1, H)),
                            jnp.reshape(p["b3"], (1, H))], axis=0).astype(f32)  # (3, H)
    w4 = jnp.pad(p["w4"].astype(f32), ((0, 0), (0, NP - N)))          # (H, NP)

    eye = jnp.eye(B, dtype=f32)
    poolw = jnp.stack([jnp.kron(eye, p["pw1"].astype(f32)),
                       jnp.kron(eye, p["pw2"].astype(f32))])          # (2, BC, BC)
    poolv = jnp.stack([jnp.tile(jnp.reshape(p["pb1"], (C, 1)).astype(f32), (B, NP)),
                       jnp.tile(jnp.reshape(p["pb2"], (C, 1)).astype(f32), (B, NP)),
                       jnp.tile(jnp.reshape(p["pw3"], (C, 1)).astype(f32), (B, NP))])
    return vec, w1, w23, b123, w4, poolw, poolv


def _stream_block(shape):
    """Full-array block except the leading stream axis, indexed by the grid."""
    rest = len(shape) - 1

    def idx(i):
        return (i,) + (0,) * rest

    return pl.BlockSpec((1,) + tuple(shape[1:]), idx)


def quant_table_predictor(streams, params, noises, inference_scalar=1.0):
    """Fused forward for K streams sharing shape [B, C, N].

    streams : list of K arrays [B, C, N]
    params  : list of K per-stream parameter dicts (see init_stream_params)
    noises  : list of K arrays [B, N] of uniform(-0.5, 0.5) rounding noise
    returns : (K, B, N) float32 quant tables
    """
    K = len(streams)
    assert all(s.shape == streams[0].shape for s in streams), \
        "fused path requires all streams to share [B, C, N]"
    # TODO(synk): streams with differing C would need per-C-group calls.
    B, C, N = streams[0].shape
    NP = max(128, ((N + 127) // 128) * 128)      # lane-dense output width

    x = jnp.stack([jnp.asarray(s, jnp.float32) for s in streams])            # (K,B,C,N)
    noise = jnp.stack([jnp.pad(jnp.asarray(n, jnp.float32),
                               ((0, 0), (0, NP - N))) for n in noises])       # (K,B,NP)
    packed = [_pack_stream(p, B, C, N, NP) for p in params]
    vec, w1, w23, b123, w4, poolw, poolv = (jnp.stack(z) for z in zip(*packed))
    scalar = jnp.asarray([inference_scalar], jnp.float32)    # SMEM (no recompiles)

    in_specs = [
        _stream_block(x.shape), _stream_block(vec.shape), _stream_block(noise.shape),
        _stream_block(w1.shape), _stream_block(w23.shape), _stream_block(b123.shape),
        _stream_block(w4.shape), _stream_block(poolw.shape), _stream_block(poolv.shape),
        pl.BlockSpec(memory_space=pltpu.MemorySpace.SMEM),    # inference_scalar
    ]

    fn = pl.pallas_call(
        _qtp_kernel,
        out_shape=jax.ShapeDtypeStruct((K, B, NP), jnp.float32),
        grid=(K,),
        in_specs=in_specs,
        out_specs=pl.BlockSpec((1, B, NP), lambda i: (i, 0, 0)),
        compiler_params=pltpu.CompilerParams(
            dimension_semantics=("parallel",),     # shard streams across TCs on v7x
            vmem_limit_bytes=32 * 1024 * 1024),    # headroom for v5e's 16 MiB default
    )
    out = fn(x, vec, noise, w1, w23, b123, w4, poolw, poolv, scalar)
    return out[:, :, :N]


def init_stream_params(key, C, N):
    """Deterministic synthetic init (PyTorch-Linear-style uniform bounds), f32."""
    H = 3 * N
    keys = jax.random.split(key, 14)

    def lin(kw, kb, shape_w, fan_in, shape_b):
        bound = 1.0 / math.sqrt(fan_in)
        w = jax.random.uniform(kw, shape_w, jnp.float32, -bound, bound)
        b = jax.random.uniform(kb, shape_b, jnp.float32, -bound, bound)
        return w, b

    p = {}
    # per-stream MLP weights stored as [in, out]
    p["w1"], p["b1"] = lin(keys[0], keys[1], (N, H), N, (1, H))
    p["w2"], p["b2"] = lin(keys[2], keys[3], (H, H), H, (1, H))
    p["w3"], p["b3"] = lin(keys[4], keys[5], (H, H), H, (1, H))
    p["w4"], p["b4"] = lin(keys[6], keys[7], (H, N), H, (1, N))
    # pooling MLP weights stored as [out, in] (used in transposed form)
    p["pw1"], p["pb1"] = lin(keys[8], keys[9], (C, C), C, (C, 1))
    p["pw2"], p["pb2"] = lin(keys[10], keys[11], (C, C), C, (C, 1))
    p["pw3"], p["pb3"] = lin(keys[12], keys[13], (1, C), C, (1, 1))
    # module defaults: mean=zeros(N), var=ones(N)
    p["mean"] = jnp.zeros((1, N), jnp.float32)
    p["var"] = jnp.ones((1, N), jnp.float32)
    return p


def reference_no_noise(stream, p, inference_scalar=1.0):
    """Pure-JAX f32 forward (identical math, minus the rounding noise)."""
    def leaky(v):
        return jnp.where(v >= 0, v, _LEAKY_SLOPE * v)
    x = (stream - p["mean"]) / p["var"]
    h = leaky(jnp.einsum("bcn,nh->bch", x, p["w1"]) + p["b1"])
    h = leaky(jnp.einsum("bch,hk->bck", h, p["w2"]) + p["b2"])
    h = leaky(jnp.einsum("bck,kl->bcl", h, p["w3"]) + p["b3"])
    h = jnp.maximum(jnp.einsum("bch,hn->bcn", h, p["w4"]) + p["b4"], 0.0)
    t = jnp.transpose(h, (0, 2, 1))                                        # (B, N, C)
    q = leaky(jnp.einsum("bnc,dc->bnd", t, p["pw1"]) + p["pb1"][:, 0])
    q = leaky(jnp.einsum("bnc,dc->bnd", q, p["pw2"]) + p["pb2"][:, 0])
    q = jnp.maximum(jnp.einsum("bnc,dc->bnd", q, p["pw3"]) + p["pb3"][:, 0], 0.0)  # (B, N, 1)
    return (q[..., 0] + _ROUND_BIAS) * inference_scalar


if __name__ == "__main__":
    key = jax.random.PRNGKey(0)
    K = 2
    N = 64
    C = [8, 8]          # fused path: all streams share C
    B = 2
    inference_scalar = 1.0

    k_stream, k_param, k_noise = jax.random.split(key, 3)
    params = [init_stream_params(jax.random.fold_in(k_param, i), C[i], N) for i in range(K)]
    streams = [jax.random.normal(jax.random.fold_in(k_stream, i), (B, C[i], N), jnp.float32)
               for i in range(K)]
    # noise_round's uniform(-0.5, 0.5) noise, generated host-side per stream.
    noises = [jax.random.uniform(jax.random.fold_in(k_noise, i), (B, N), jnp.float32, -0.5, 0.5)
              for i in range(K)]

    tables = quant_table_predictor(streams, params, noises,
                                   inference_scalar=inference_scalar)
    tables = jax.block_until_ready(tables)
    assert tables.shape == (K, B, N)

    # sanity: (kernel output - injected noise) must match the noiseless f32
    # reference up to bf16 weight/activation quantization error, and sit
    # inside the +-0.5 noise band of the reference.
    for i in range(K):
        ref = reference_no_noise(streams[i], params[i], inference_scalar)
        max_diff = float(jnp.max(jnp.abs(tables[i] - noises[i] - ref)))
        assert max_diff <= 5e-2, max_diff
        band = float(jnp.max(jnp.abs(tables[i] - ref)))
        assert band <= 0.5 + 5e-2, band

    print("KERNEL_OK")
</pallas_src>

<mosaic_0001>
module attributes {stable_mosaic.version = 11 : i64} {
  func.func @_qtp_kernel(%arg0: i32, %arg1: memref<1x2x8x64xf32, #tpu.memory_space<vmem>>, %arg2: memref<1x4x128xf32, #tpu.memory_space<vmem>>, %arg3: memref<1x2x128xf32, #tpu.memory_space<vmem>>, %arg4: memref<1x64x192xbf16, #tpu.memory_space<vmem>>, %arg5: memref<1x2x192x192xbf16, #tpu.memory_space<vmem>>, %arg6: memref<1x3x192xf32, #tpu.memory_space<vmem>>, %arg7: memref<1x192x128xf32, #tpu.memory_space<vmem>>, %arg8: memref<1x2x16x16xf32, #tpu.memory_space<vmem>>, %arg9: memref<1x3x16x128xf32, #tpu.memory_space<vmem>>, %arg10: memref<1xf32, #tpu.memory_space<smem>>, %arg11: memref<1x2x128xf32, #tpu.memory_space<vmem>>) attributes {dimension_semantics = [#tpu.dimension_semantics<parallel>], iteration_bounds = array<i64: 2>, scalar_prefetch = 0 : i64, scratch_operands = 0 : i64, tpu.core_type = #tpu.core_type<tc>, window_params = [{transform_indices = @transform_0, window_bounds = array<i64: 1, 2, 8, 64>}, {transform_indices = @transform_1, window_bounds = array<i64: 1, 4, 128>}, {transform_indices = @transform_2, window_bounds = array<i64: 1, 2, 128>}, {transform_indices = @transform_3, window_bounds = array<i64: 1, 64, 192>}, {transform_indices = @transform_4, window_bounds = array<i64: 1, 2, 192, 192>}, {transform_indices = @transform_5, window_bounds = array<i64: 1, 3, 192>}, {transform_indices = @transform_6, window_bounds = array<i64: 1, 192, 128>}, {transform_indices = @transform_7, window_bounds = array<i64: 1, 2, 16, 16>}, {transform_indices = @transform_8, window_bounds = array<i64: 1, 3, 16, 128>}, {transform_indices = @transform_9, window_bounds = array<i64: 1>}, {transform_indices = @transform_10, window_bounds = array<i64: 1, 2, 128>}]} {
    %c0 = arith.constant 0 : index
    %c0_0 = arith.constant 0 : index
    %c0_1 = arith.constant 0 : index
    %0 = vector.load %arg2[%c0, %c0_0, %c0_1] : memref<1x4x128xf32, #tpu.memory_space<vmem>>, vector<1x4x128xf32>
    %1 = vector.shape_cast %0 : vector<1x4x128xf32> to vector<4x128xf32>
    %c0_2 = arith.constant 0 : index
    %c0_3 = arith.constant 0 : index
    %c0_4 = arith.constant 0 : index
    %2 = vector.load %arg6[%c0_2, %c0_3, %c0_4] : memref<1x3x192xf32, #tpu.memory_space<vmem>>, vector<1x3x192xf32>
    %3 = vector.shape_cast %2 : vector<1x3x192xf32> to vector<3x192xf32>
    %c0_5 = arith.constant 0 : index
    %c0_6 = arith.constant 0 : index
    %c0_7 = arith.constant 0 : index
    %c0_8 = arith.constant 0 : index
    %4 = vector.load %arg1[%c0_5, %c0_6, %c0_7, %c0_8] : memref<1x2x8x64xf32, #tpu.memory_space<vmem>>, vector<1x2x8x64xf32>
    %5 = vector.shape_cast %4 : vector<1x2x8x64xf32> to vector<2x8x64xf32>
    %6 = vector.shape_cast %5 : vector<2x8x64xf32> to vector<16x64xf32>
    %7 = vector.extract_strided_slice %1 {offsets = [0, 0], sizes = [1, 64], strides = [1, 1]} : vector<4x128xf32> to vector<1x64xf32>
    %8 = vector.broadcast %7 : vector<1x64xf32> to vector<16x64xf32>
    %9 = arith.subf %6, %8 : vector<16x64xf32>
    %10 = vector.extract_strided_slice %1 {offsets = [1, 0], sizes = [1, 64], strides = [1, 1]} : vector<4x128xf32> to vector<1x64xf32>
    %11 = vector.broadcast %10 : vector<1x64xf32> to vector<16x64xf32>
    %12 = arith.mulf %9, %11 : vector<16x64xf32>
    %13 = arith.truncf %12 : vector<16x64xf32> to vector<16x64xbf16>
    %c0_9 = arith.constant 0 : index
    %c0_10 = arith.constant 0 : index
    %c0_11 = arith.constant 0 : index
    %14 = vector.load %arg4[%c0_9, %c0_10, %c0_11] : memref<1x64x192xbf16, #tpu.memory_space<vmem>>, vector<1x64x192xbf16>
    %15 = vector.shape_cast %14 : vector<1x64x192xbf16> to vector<64x192xbf16>
    %cst = arith.constant dense<0.000000e+00> : vector<16x192xf32>
    %16 = tpu.matmul %13, %15, %cst {dimension_numbers = #tpu.dot_dimension_numbers<[1], [0], [0], [1], [0, 0, 1, 1], [], []>} : vector<16x64xbf16>, vector<64x192xbf16>, vector<16x192xf32> -> vector<16x192xf32>
    %17 = vector.extract_strided_slice %3 {offsets = [0, 0], sizes = [1, 192], strides = [1, 1]} : vector<3x192xf32> to vector<1x192xf32>
    %18 = vector.broadcast %17 : vector<1x192xf32> to vector<16x192xf32>
    %19 = arith.addf %16, %18 : vector<16x192xf32>
    %cst_12 = arith.constant 0.000000e+00 : f32
    %20 = vector.broadcast %cst_12 : f32 to vector<16x192xf32>
    %21 = arith.cmpf oge, %19, %20 : vector<16x192xf32>
    %cst_13 = arith.constant 0.00999999977 : f32
    %22 = vector.broadcast %cst_13 : f32 to vector<16x192xf32>
    %23 = arith.mulf %22, %19 : vector<16x192xf32>
    %24 = arith.select %21, %19, %23 : vector<16x192xi1>, vector<16x192xf32>
    %25 = arith.truncf %24 : vector<16x192xf32> to vector<16x192xbf16>
    %c0_14 = arith.constant 0 : index
    %c0_15 = arith.constant 0 : index
    %c0_16 = arith.constant 0 : index
    %c0_17 = arith.constant 0 : index
    %26 = vector.load %arg5[%c0_14, %c0_15, %c0_16, %c0_17] : memref<1x2x192x192xbf16, #tpu.memory_space<vmem>>, vector<1x1x192x192xbf16>
    %27 = vector.shape_cast %26 : vector<1x1x192x192xbf16> to vector<192x192xbf16>
    %cst_18 = arith.constant dense<0.000000e+00> : vector<16x192xf32>
    %28 = tpu.matmul %25, %27, %cst_18 {dimension_numbers = #tpu.dot_dimension_numbers<[1], [0], [0], [1], [0, 0, 1, 1], [], []>} : vector<16x192xbf16>, vector<192x192xbf16>, vector<16x192xf32> -> vector<16x192xf32>
    %29 = vector.extract_strided_slice %3 {offsets = [1, 0], sizes = [1, 192], strides = [1, 1]} : vector<3x192xf32> to vector<1x192xf32>
    %30 = vector.broadcast %29 : vector<1x192xf32> to vector<16x192xf32>
    %31 = arith.addf %28, %30 : vector<16x192xf32>
    %cst_19 = arith.constant 0.000000e+00 : f32
    %32 = vector.broadcast %cst_19 : f32 to vector<16x192xf32>
    %33 = arith.cmpf oge, %31, %32 : vector<16x192xf32>
    %cst_20 = arith.constant 0.00999999977 : f32
    %34 = vector.broadcast %cst_20 : f32 to vector<16x192xf32>
    %35 = arith.mulf %34, %31 : vector<16x192xf32>
    %36 = arith.select %33, %31, %35 : vector<16x192xi1>, vector<16x192xf32>
    %37 = arith.truncf %36 : vector<16x192xf32> to vector<16x192xbf16>
    %c0_21 = arith.constant 0 : index
    %c1 = arith.constant 1 : index
    %c0_22 = arith.constant 0 : index
    %c0_23 = arith.constant 0 : index
    %38 = vector.load %arg5[%c0_21, %c1, %c0_22, %c0_23] : memref<1x2x192x192xbf16, #tpu.memory_space<vmem>>, vector<1x1x192x192xbf16>
    %39 = vector.shape_cast %38 : vector<1x1x192x192xbf16> to vector<192x192xbf16>
    %cst_24 = arith.constant dense<0.000000e+00> : vector<16x192xf32>
    %40 = tpu.matmul %37, %39, %cst_24 {dimension_numbers = #tpu.dot_dimension_numbers<[1], [0], [0], [1], [0, 0, 1, 1], [], []>} : vector<16x192xbf16>, vector<192x192xbf16>, vector<16x192xf32> -> vector<16x192xf32>
    %41 = vector.extract_strided_slice %3 {offsets = [2, 0], sizes = [1, 192], strides = [1, 1]} : vector<3x192xf32> to vector<1x192xf32>
    %42 = vector.broadcast %41 : vector<1x192xf32> to vector<16x192xf32>
    %43 = arith.addf %40, %42 : vector<16x192xf32>
    %cst_25 = arith.constant 0.000000e+00 : f32
    %44 = vector.broadcast %cst_25 : f32 to vector<16x192xf32>
    %45 = arith.cmpf oge, %43, %44 : vector<16x192xf32>
    %cst_26 = arith.constant 0.00999999977 : f32
    %46 = vector.broadcast %cst_26 : f32 to vector<16x192xf32>
    %47 = arith.mulf %46, %43 : vector<16x192xf32>
    %48 = arith.select %45, %43, %47 : vector<16x192xi1>, vector<16x192xf32>
    %c0_27 = arith.constant 0 : index
    %c0_28 = arith.constant 0 : index
    %c0_29 = arith.constant 0 : index
    %49 = vector.load %arg7[%c0_27, %c0_28, %c0_29] : memref<1x192x128xf32, #tpu.memory_space<vmem>>, vector<1x192x128xf32>
    %50 = vector.shape_cast %49 : vector<1x192x128xf32> to vector<192x128xf32>
    %cst_30 = arith.constant dense<0.000000e+00> : vector<16x128xf32>
    %51 = tpu.matmul %48, %50, %cst_30 {dimension_numbers = #tpu.dot_dimension_numbers<[1], [0], [0], [1], [0, 0, 1, 1], [], []>} : vector<16x192xf32>, vector<192x128xf32>, vector<16x128xf32> -> vector<16x128xf32>
    %52 = vector.extract_strided_slice %1 {offsets = [2, 0], sizes = [1, 128], strides = [1, 1]} : vector<4x128xf32> to vector<1x128xf32>
    %53 = vector.broadcast %52 : vector<1x128xf32> to vector<16x128xf32>
    %54 = arith.addf %51, %53 : vector<16x128xf32>
    %cst_31 = arith.constant 0.000000e+00 : f32
    %55 = vector.broadcast %cst_31 : f32 to vector<16x128xf32>
    %56 = arith.maximumf %54, %55 : vector<16x128xf32>
    %c0_32 = arith.constant 0 : index
    %c0_33 = arith.constant 0 : index
    %c0_34 = arith.constant 0 : index
    %c0_35 = arith.constant 0 : index
    %57 = vector.load %arg8[%c0_32, %c0_33, %c0_34, %c0_35] : memref<1x2x16x16xf32, #tpu.memory_space<vmem>>, vector<1x1x16x16xf32>
    %58 = vector.shape_cast %57 : vector<1x1x16x16xf32> to vector<16x16xf32>
    %cst_36 = arith.constant dense<0.000000e+00> : vector<16x128xf32>
    %59 = tpu.matmul %58, %56, %cst_36 {dimension_numbers = #tpu.dot_dimension_numbers<[1], [0], [0], [1], [0, 0, 1, 1], [], []>} : vector<16x16xf32>, vector<16x128xf32>, vector<16x128xf32> -> vector<16x128xf32>
    %c0_37 = arith.constant 0 : index
    %c0_38 = arith.constant 0 : index
    %c0_39 = arith.constant 0 : index
    %c0_40 = arith.constant 0 : index
    %60 = vector.load %arg9[%c0_37, %c0_38, %c0_39, %c0_40] : memref<1x3x16x128xf32, #tpu.memory_space<vmem>>, vector<1x1x16x128xf32>
    %61 = vector.shape_cast %60 : vector<1x1x16x128xf32> to vector<16x128xf32>
    %62 = arith.addf %59, %61 : vector<16x128xf32>
    %cst_41 = arith.constant 0.000000e+00 : f32
    %63 = vector.broadcast %cst_41 : f32 to vector<16x128xf32>
    %64 = arith.cmpf oge, %62, %63 : vector<16x128xf32>
    %cst_42 = arith.constant 0.00999999977 : f32
    %65 = vector.broadcast %cst_42 : f32 to vector<16x128xf32>
    %66 = arith.mulf %65, %62 : vector<16x128xf32>
    %67 = arith.select %64, %62, %66 : vector<16x128xi1>, vector<16x128xf32>
    %c0_43 = arith.constant 0 : index
    %c1_44 = arith.constant 1 : index
    %c0_45 = arith.constant 0 : index
    %c0_46 = arith.constant 0 : index
    %68 = vector.load %arg8[%c0_43, %c1_44, %c0_45, %c0_46] : memref<1x2x16x16xf32, #tpu.memory_space<vmem>>, vector<1x1x16x16xf32>
    %69 = vector.shape_cast %68 : vector<1x1x16x16xf32> to vector<16x16xf32>
    %cst_47 = arith.constant dense<0.000000e+00> : vector<16x128xf32>
    %70 = tpu.matmul %69, %67, %cst_47 {dimension_numbers = #tpu.dot_dimension_numbers<[1], [0], [0], [1], [0, 0, 1, 1], [], []>} : vector<16x16xf32>, vector<16x128xf32>, vector<16x128xf32> -> vector<16x128xf32>
    %c0_48 = arith.constant 0 : index
    %c1_49 = arith.constant 1 : index
    %c0_50 = arith.constant 0 : index
    %c0_51 = arith.constant 0 : index
    %71 = vector.load %arg9[%c0_48, %c1_49, %c0_50, %c0_51] : memref<1x3x16x128xf32, #tpu.memory_space<vmem>>, vector<1x1x16x128xf32>
    %72 = vector.shape_cast %71 : vector<1x1x16x128xf32> to vector<16x128xf32>
    %73 = arith.addf %70, %72 : vector<16x128xf32>
    %cst_52 = arith.constant 0.000000e+00 : f32
    %74 = vector.broadcast %cst_52 : f32 to vector<16x128xf32>
    %75 = arith.cmpf oge, %73, %74 : vector<16x128xf32>
    %cst_53 = arith.constant 0.00999999977 : f32
    %76 = vector.broadcast %cst_53 : f32 to vector<16x128xf32>
    %77 = arith.mulf %76, %73 : vector<16x128xf32>
    %78 = arith.select %75, %73, %77 : vector<16x128xi1>, vector<16x128xf32>
    %c0_54 = arith.constant 0 : index
    %c2 = arith.constant 2 : index
    %c0_55 = arith.constant 0 : index
    %c0_56 = arith.constant 0 : index
    %79 = vector.load %arg9[%c0_54, %c2, %c0_55, %c0_56] : memref<1x3x16x128xf32, #tpu.memory_space<vmem>>, vector<1x1x16x128xf32>
    %80 = vector.shape_cast %79 : vector<1x1x16x128xf32> to vector<16x128xf32>
    %81 = arith.mulf %80, %78 : vector<16x128xf32>
    %82 = vector.shape_cast %81 : vector<16x128xf32> to vector<2x8x128xf32>
    %cst_57 = arith.constant dense<0.000000e+00> : vector<2x128xf32>
    %83 = vector.multi_reduction <add>, %82, %cst_57 [1] : vector<2x8x128xf32> to vector<2x128xf32>
    %84 = vector.extract_strided_slice %1 {offsets = [3, 0], sizes = [1, 128], strides = [1, 1]} : vector<4x128xf32> to vector<1x128xf32>
    %85 = vector.broadcast %84 : vector<1x128xf32> to vector<2x128xf32>
    %86 = arith.addf %83, %85 : vector<2x128xf32>
    %cst_58 = arith.constant 0.000000e+00 : f32
    %87 = vector.broadcast %cst_58 : f32 to vector<2x128xf32>
    %88 = arith.maximumf %86, %87 : vector<2x128xf32>
    %cst_59 = arith.constant 1.490000e+00 : f32
    %89 = vector.broadcast %cst_59 : f32 to vector<2x128xf32>
    %90 = arith.addf %88, %89 : vector<2x128xf32>
    %c0_60 = arith.constant 0 : index
    %91 = memref.load %arg10[%c0_60] : memref<1xf32, #tpu.memory_space<smem>>
    %92 = vector.broadcast %91 : f32 to vector<2x128xf32>
    %93 = arith.mulf %90, %92 : vector<2x128xf32>
    %c0_61 = arith.constant 0 : index
    %c0_62 = arith.constant 0 : index
    %c0_63 = arith.constant 0 : index
    %94 = vector.load %arg3[%c0_61, %c0_62, %c0_63] : memref<1x2x128xf32, #tpu.memory_space<vmem>>, vector<1x2x128xf32>
    %95 = vector.shape_cast %94 : vector<1x2x128xf32> to vector<2x128xf32>
    %96 = arith.addf %93, %95 : vector<2x128xf32>
    %c0_64 = arith.constant 0 : index
    %c0_65 = arith.constant 0 : index
    %c0_66 = arith.constant 0 : index
    %97 = vector.load %arg11[%c0_64, %c0_65, %c0_66] : memref<1x2x128xf32, #tpu.memory_space<vmem>>, vector<1x2x128xf32>
    %98 = vector.shape_cast %97 : vector<1x2x128xf32> to vector<2x128xf32>
    %99 = vector.shape_cast %96 : vector<2x128xf32> to vector<1x2x128xf32>
    tpu.vector_store %arg11[%c0_64, %c0_65, %c0_66], %99 {strides = array<i32>} : memref<1x2x128xf32, #tpu.memory_space<vmem>>, vector<1x2x128xf32>,
    return
  }
  func.func @transform_0(%arg0: i32) -> (i32, i32, i32, i32) {
    %c0_i32 = arith.constant 0 : i32
    %c0_i32_0 = arith.constant 0 : i32
    %c0_i32_1 = arith.constant 0 : i32
    %c0_i32_2 = arith.constant 0 : i32
    return %arg0, %c0_i32, %c0_i32_0, %c0_i32_1 : i32, i32, i32, i32
  }
  func.func @transform_1(%arg0: i32) -> (i32, i32, i32) {
    %c0_i32 = arith.constant 0 : i32
    %c0_i32_0 = arith.constant 0 : i32
    %c0_i32_1 = arith.constant 0 : i32
    return %arg0, %c0_i32, %c0_i32_0 : i32, i32, i32
  }
  func.func @transform_2(%arg0: i32) -> (i32, i32, i32) {
    %c0_i32 = arith.constant 0 : i32
    %c0_i32_0 = arith.constant 0 : i32
    %c0_i32_1 = arith.constant 0 : i32
    return %arg0, %c0_i32, %c0_i32_0 : i32, i32, i32
  }
  func.func @transform_3(%arg0: i32) -> (i32, i32, i32) {
    %c0_i32 = arith.constant 0 : i32
    %c0_i32_0 = arith.constant 0 : i32
    %c0_i32_1 = arith.constant 0 : i32
    return %arg0, %c0_i32, %c0_i32_0 : i32, i32, i32
  }
  func.func @transform_4(%arg0: i32) -> (i32, i32, i32, i32) {
    %c0_i32 = arith.constant 0 : i32
    %c0_i32_0 = arith.constant 0 : i32
    %c0_i32_1 = arith.constant 0 : i32
    %c0_i32_2 = arith.constant 0 : i32
    return %arg0, %c0_i32, %c0_i32_0, %c0_i32_1 : i32, i32, i32, i32
  }
  func.func @transform_5(%arg0: i32) -> (i32, i32, i32) {
    %c0_i32 = arith.constant 0 : i32
    %c0_i32_0 = arith.constant 0 : i32
    %c0_i32_1 = arith.constant 0 : i32
    return %arg0, %c0_i32, %c0_i32_0 : i32, i32, i32
  }
  func.func @transform_6(%arg0: i32) -> (i32, i32, i32) {
    %c0_i32 = arith.constant 0 : i32
    %c0_i32_0 = arith.constant 0 : i32
    %c0_i32_1 = arith.constant 0 : i32
    return %arg0, %c0_i32, %c0_i32_0 : i32, i32, i32
  }
  func.func @transform_7(%arg0: i32) -> (i32, i32, i32, i32) {
    %c0_i32 = arith.constant 0 : i32
    %c0_i32_0 = arith.constant 0 : i32
    %c0_i32_1 = arith.constant 0 : i32
    %c0_i32_2 = arith.constant 0 : i32
    return %arg0, %c0_i32, %c0_i32_0, %c0_i32_1 : i32, i32, i32, i32
  }
  func.func @transform_8(%arg0: i32) -> (i32, i32, i32, i32) {
    %c0_i32 = arith.constant 0 : i32
    %c0_i32_0 = arith.constant 0 : i32
    %c0_i32_1 = arith.constant 0 : i32
    %c0_i32_2 = arith.constant 0 : i32
    return %arg0, %c0_i32, %c0_i32_0, %c0_i32_1 : i32, i32, i32, i32
  }
  func.func @transform_9(%arg0: i32) -> i32 {
    %c0_i32 = arith.constant 0 : i32
    %c0_i32_0 = arith.constant 0 : i32
    return %c0_i32 : i32
  }
  func.func @transform_10(%arg0: i32) -> (i32, i32, i32) {
    %c0_i32 = arith.constant 0 : i32
    %c0_i32_0 = arith.constant 0 : i32
    %c0_i32_1 = arith.constant 0 : i32
    return %arg0, %c0_i32, %c0_i32_0 : i32, i32, i32
  }
}

</mosaic_0001>

<llo_original>
// kernel: tpu_custom_call.1
$region0: #{tpu_custom_call.1}
  #allocation0 [shape = 'u32[]', space=smem, size = 0x4, offset = 0x4, fixed_abs, tag = 'smem constant byte address 0x4 - core index']
  #allocation1 [shape = 'u32[144,128]{1,0:T(1,128)}', space=vmem, size = 0x12000, scoped, tag = 'internal scratch']
  #allocation2 [shape = 'f32[1]{0:T(128)S(6)}', space=smem, size = 0x200, scoped, tag = 'scoped memory for tpu_custom_call.1']
  %s0 = inlined_call_operand.hbm [shape: f32[2,2,8,64], index: 0, kind: input, shape index: {}]
  %s1 = inlined_call_operand.vmem [shape: f32[2,4,128], index: 1, kind: input, shape index: {}]
  %s2 = inlined_call_operand.vmem [shape: f32[2,2,128], index: 2, kind: input, shape index: {}]
  %s3 = inlined_call_operand.hbm [shape: bf16[2,64,192], index: 3, kind: input, shape index: {}]
  %s4 = inlined_call_operand.hbm [shape: bf16[2,2,192,192], index: 4, kind: input, shape index: {}]
  %s5 = inlined_call_operand.vmem [shape: f32[2,3,192], index: 5, kind: input, shape index: {}]
  %s6 = inlined_call_operand.hbm [shape: f32[2,192,128], index: 6, kind: input, shape index: {}]
  %s7 = inlined_call_operand.hbm [shape: f32[2,2,16,16], index: 7, kind: input, shape index: {}]
  %s8 = inlined_call_operand.hbm [shape: f32[2,3,16,128], index: 8, kind: input, shape index: {}]
  %s9 = inlined_call_operand.<no memory space> [shape: f32[1], index: 9, kind: input, shape index: {}]
  %s10 = inlined_call_operand.hbm [shape: f32[2,2,128], index: 10, kind: output, shape index: {}]
  %s11 = sld [smem:[#allocation0]]
  $region97: #{tpu_custom_call.1} parent=0
    _
  %s13 = ssub.s32 1, %s11
  %s14 = scalar_select 0, %s13, %s11
  %15 = sst [smem:[#allocation2]] %s9
  $region1: #{tpu_custom_call.1} parent=0
    #allocation3 [shape = 'u8[16384]{0}', space=vmem, size = 0x4000, scoped, tag = 'input window, operand 0']
    #allocation4 [shape = 's32[2]{0}', space=sflag, size = 0x8, scoped, tag = 'scoped memory for tpu_custom_call.1']
    #allocation5 [shape = 's32[2]{0}', space=sflag, size = 0x8, scoped, tag = 'scoped memory for tpu_custom_call.1']
    #allocation6 [shape = 'u8[65536]{0}', space=vmem, size = 0x10000, scoped, tag = 'input window, operand 3']
    #allocation7 [shape = 's32[2]{0}', space=sflag, size = 0x8, scoped, tag = 'scoped memory for tpu_custom_call.1']
    #allocation8 [shape = 'u8[393216]{0}', space=vmem, size = 0x60000, scoped, tag = 'input window, operand 4']
    #allocation9 [shape = 'u8[196608]{0}', space=vmem, size = 0x30000, scoped, tag = 'input window, operand 6']
    #allocation10 [shape = 's32[2]{0}', space=sflag, size = 0x8, scoped, tag = 'scoped memory for tpu_custom_call.1']
    #allocation11 [shape = 'u8[32768]{0}', space=vmem, size = 0x8000, scoped, tag = 'input window, operand 7']
    #allocation12 [shape = 'u8[49152]{0}', space=vmem, size = 0xc000, scoped, tag = 'input window, operand 8']
    #allocation13 [shape = 's32[2]{0}', space=sflag, size = 0x8, scoped, tag = 'scoped memory for tpu_custom_call.1']
    #allocation14 [shape = 'u8[2048]{0}', space=vmem, size = 0x800, scoped, tag = 'output window, operand 0']
    %16 = vsyncpa [#allocation4], 0
    %s17 = scalar_lea.sflag [#allocation4], 1
    %18 = vsyncpa %s17, 0
    %19 = vsyncpa [#allocation7], 0
    %s20 = scalar_lea.sflag [#allocation7], 1
    %21 = vsyncpa %s20, 0
    %22 = vsyncpa [#allocation10], 0
    %s23 = scalar_lea.sflag [#allocation10], 1
    %24 = vsyncpa %s23, 0
    %25 = vsyncpa [#allocation13], 0
    %s26 = scalar_lea.sflag [#allocation13], 1
    %27 = vsyncpa %s26, 0
    %28 = vsyncpa [#allocation5], 0
    %s29 = scalar_lea.sflag [#allocation5], 1
    %30 = vsyncpa %s29, 0
    loop: start=0, step=1, limit=4
    $region2: #{tpu_custom_call.1} parent=1 // loop_pre_header
      _
    $region3: #{tpu_custom_call.1} parent=1 // loop_header
      %s32 = sphi 0, %s36
      %p33 = scmp.ge.s32.totalorder %s32, 4
      %s42 = sphi 0, %s44
      %s45 = sphi 0, %s42
      %s46 = sphi 0, %s45
      %s62 = sphi 0, %s46
      %s68 = sphi 0, %s70
      %s71 = sphi 0, %s68
      %s72 = sphi 0, %s71
      %s88 = sphi 0, %s72
      %s94 = sphi 0, %s96
      %s97 = sphi 0, %s94
      %s98 = sphi 0, %s97
      %s114 = sphi 0, %s98
      %s120 = sphi 0, %s122
      %s123 = sphi 0, %s120
      %s124 = sphi 0, %s123
      %s140 = sphi 0, %s124
      %s146 = sphi 0, %s148
      %s149 = sphi 0, %s146
      %s150 = sphi 0, %s149
      %s166 = sphi 0, %s150
      %s172 = sphi 0, %s174
      %s175 = sphi 0, %s172
      %s176 = sphi 0, %s175
      %s192 = sphi 0, %s176
      %s198 = sphi 0, %s200
      %s201 = sphi 0, %s198
      %s202 = sphi 0, %s201
      %s218 = sphi 0, %s202
      %s224 = sphi 0, %s226
      %s227 = sphi 0, %s224
      %s228 = sphi 0, %s227
      %s244 = sphi 0, %s228
      %s250 = sphi 0, %s252
      %s253 = sphi 0, %s250
      %s254 = sphi 0, %s253
      %s270 = sphi 0, %s254
      %s274 = sphi 0, %s274
      %s276 = sphi 0, %s274
      %s277 = sphi 0, %s276
      %s291 = sphi 0, %s277
      %s297 = sphi 0, %s299
      %s300 = sphi 0, %s297
      %s301 = sphi 0, %s300
      %s317 = sphi 0, %s301
    $region4: #{tpu_custom_call.1} parent=1 // loop_header_branch
      %35 = sbr.rel (%p33) target = $region8
    $region5: #{tpu_custom_call.1} parent=1 // loop_body
      %s37 = ssub.s32 %s32, 1
      %s38 = ssub.s32 %s32, 2
      %s39 = sadd.s32 %s32, 1
      %s40 = ssub.s32 %s32, %s39
      %p41 = scmp.eq.s32.totalorder %s40, 0
      %s43 = sadd.s32 %s42, 1
      %s44 = scalar_select %p41, %s42, %s43
      %p47 = pneg %p41
      %p48 = scmp.eq.s32.totalorder %s32, 1
      %p49 = por %p47, %p48
      %p50 = scmp.ne.s32.totalorder %s42, %s45
      %p51 = scmp.eq.s32.totalorder %s32, 0
      %p52 = por %p50, %p51
      %p53 = scmp.ne.s32.totalorder %s42, %s45
      %p54 = scmp.eq.s32.totalorder %s37, 1
      %p55 = por %p53, %p54
      %p56 = scmp.ne.s32.totalorder %s45, %s46
      %p57 = scmp.eq.s32.totalorder %s37, 0
      %p58 = por %p56, %p57
      %p59 = scmp.ne.s32.totalorder %s45, %s46
      %p60 = scmp.eq.s32.totalorder %s38, 1
      %p61 = por %p59, %p60
      %p63 = scmp.ne.s32.totalorder %s46, %s62
      %p64 = scmp.eq.s32.totalorder %s38, 0
      %p65 = por %p63, %p64
      %s66 = ssub.s32 %s32, %s39
      %p67 = scmp.eq.s32.totalorder %s66, 0
      %s69 = sadd.s32 %s68, 1
      %s70 = scalar_select %p67, %s68, %s69
      %p73 = pneg %p67
      %p74 = scmp.eq.s32.totalorder %s32, 1
      %p75 = por %p73, %p74
      %p76 = scmp.ne.s32.totalorder %s68, %s71
      %p77 = scmp.eq.s32.totalorder %s32, 0
      %p78 = por %p76, %p77
      %p79 = scmp.ne.s32.totalorder %s68, %s71
      %p80 = scmp.eq.s32.totalorder %s37, 1
      %p81 = por %p79, %p80
      %p82 = scmp.ne.s32.totalorder %s71, %s72
      %p83 = scmp.eq.s32.totalorder %s37, 0
      %p84 = por %p82, %p83
      %p85 = scmp.ne.s32.totalorder %s71, %s72
      %p86 = scmp.eq.s32.totalorder %s38, 1
      %p87 = por %p85, %p86
      %p89 = scmp.ne.s32.totalorder %s72, %s88
      %p90 = scmp.eq.s32.totalorder %s38, 0
      %p91 = por %p89, %p90
      %s92 = ssub.s32 %s32, %s39
      %p93 = scmp.eq.s32.totalorder %s92, 0
      %s95 = sadd.s32 %s94, 1
      %s96 = scalar_select %p93, %s94, %s95
      %p99 = pneg %p93
      %p100 = scmp.eq.s32.totalorder %s32, 1
      %p101 = por %p99, %p100
      %p102 = scmp.ne.s32.totalorder %s94, %s97
      %p103 = scmp.eq.s32.totalorder %s32, 0
      %p104 = por %p102, %p103
      %p105 = scmp.ne.s32.totalorder %s94, %s97
      %p106 = scmp.eq.s32.totalorder %s37, 1
      %p107 = por %p105, %p106
      %p108 = scmp.ne.s32.totalorder %s97, %s98
      %p109 = scmp.eq.s32.totalorder %s37, 0
      %p110 = por %p108, %p109
      %p111 = scmp.ne.s32.totalorder %s97, %s98
      %p112 = scmp.eq.s32.totalorder %s38, 1
      %p113 = por %p111, %p112
      %p115 = scmp.ne.s32.totalorder %s98, %s114
      %p116 = scmp.eq.s32.totalorder %s38, 0
      %p117 = por %p115, %p116
      %s118 = ssub.s32 %s32, %s39
      %p119 = scmp.eq.s32.totalorder %s118, 0
      %s121 = sadd.s32 %s120, 1
      %s122 = scalar_select %p119, %s120, %s121
      %p125 = pneg %p119
      %p126 = scmp.eq.s32.totalorder %s32, 1
      %p127 = por %p125, %p126
      %p128 = scmp.ne.s32.totalorder %s120, %s123
      %p129 = scmp.eq.s32.totalorder %s32, 0
      %p130 = por %p128, %p129
      %p131 = scmp.ne.s32.totalorder %s120, %s123
      %p132 = scmp.eq.s32.totalorder %s37, 1
      %p133 = por %p131, %p132
      %p134 = scmp.ne.s32.totalorder %s123, %s124
      %p135 = scmp.eq.s32.totalorder %s37, 0
      %p136 = por %p134, %p135
      %p137 = scmp.ne.s32.totalorder %s123, %s124
      %p138 = scmp.eq.s32.totalorder %s38, 1
      %p139 = por %p137, %p138
      %p141 = scmp.ne.s32.totalorder %s124, %s140
      %p142 = scmp.eq.s32.totalorder %s38, 0
      %p143 = por %p141, %p142
      %s144 = ssub.s32 %s32, %s39
      %p145 = scmp.eq.s32.totalorder %s144, 0
      %s147 = sadd.s32 %s146, 1
      %s148 = scalar_select %p145, %s146, %s147
      %p151 = pneg %p145
      %p152 = scmp.eq.s32.totalorder %s32, 1
      %p153 = por %p151, %p152
      %p154 = scmp.ne.s32.totalorder %s146, %s149
      %p155 = scmp.eq.s32.totalorder %s32, 0
      %p156 = por %p154, %p155
      %p157 = scmp.ne.s32.totalorder %s146, %s149
      %p158 = scmp.eq.s32.totalorder %s37, 1
      %p159 = por %p157, %p158
      %p160 = scmp.ne.s32.totalorder %s149, %s150
      %p161 = scmp.eq.s32.totalorder %s37, 0
      %p162 = por %p160, %p161
      %p163 = scmp.ne.s32.totalorder %s149, %s150
      %p164 = scmp.eq.s32.totalorder %s38, 1
      %p165 = por %p163, %p164
      %p167 = scmp.ne.s32.totalorder %s150, %s166
      %p168 = scmp.eq.s32.totalorder %s38, 0
      %p169 = por %p167, %p168
      %s170 = ssub.s32 %s32, %s39
      %p171 = scmp.eq.s32.totalorder %s170, 0
      %s173 = sadd.s32 %s172, 1
      %s174 = scalar_select %p171, %s172, %s173
      %p177 = pneg %p171
      %p178 = scmp.eq.s32.totalorder %s32, 1
      %p179 = por %p177, %p178
      %p180 = scmp.ne.s32.totalorder %s172, %s175
      %p181 = scmp.eq.s32.totalorder %s32, 0
      %p182 = por %p180, %p181
      %p183 = scmp.ne.s32.totalorder %s172, %s175
      %p184 = scmp.eq.s32.totalorder %s37, 1
      %p185 = por %p183, %p184
      %p186 = scmp.ne.s32.totalorder %s175, %s176
      %p187 = scmp.eq.s32.totalorder %s37, 0
      %p188 = por %p186, %p187
      %p189 = scmp.ne.s32.totalorder %s175, %s176
      %p190 = scmp.eq.s32.totalorder %s38, 1
      %p191 = por %p189, %p190
      %p193 = scmp.ne.s32.totalorder %s176, %s192
      %p194 = scmp.eq.s32.totalorder %s38, 0
      %p195 = por %p193, %p194
      %s196 = ssub.s32 %s32, %s39
      %p197 = scmp.eq.s32.totalorder %s196, 0
      %s199 = sadd.s32 %s198, 1
      %s200 = scalar_select %p197, %s198, %s199
      %p203 = pneg %p197
      %p204 = scmp.eq.s32.totalorder %s32, 1
      %p205 = por %p203, %p204
      %p206 = scmp.ne.s32.totalorder %s198, %s201
      %p207 = scmp.eq.s32.totalorder %s32, 0
      %p208 = por %p206, %p207
      %p209 = scmp.ne.s32.totalorder %s198, %s201
      %p210 = scmp.eq.s32.totalorder %s37, 1
      %p211 = por %p209, %p210
      %p212 = scmp.ne.s32.totalorder %s201, %s202
      %p213 = scmp.eq.s32.totalorder %s37, 0
      %p214 = por %p212, %p213
      %p215 = scmp.ne.s32.totalorder %s201, %s202
      %p216 = scmp.eq.s32.totalorder %s38, 1
      %p217 = por %p215, %p216
      %p219 = scmp.ne.s32.totalorder %s202, %s218
      %p220 = scmp.eq.s32.totalorder %s38, 0
      %p221 = por %p219, %p220
      %s222 = ssub.s32 %s32, %s39
      %p223 = scmp.eq.s32.totalorder %s222, 0
      %s225 = sadd.s32 %s224, 1
      %s226 = scalar_select %p223, %s224, %s225
      %p229 = pneg %p223
      %p230 = scmp.eq.s32.totalorder %s32, 1
      %p231 = por %p229, %p230
      %p232 = scmp.ne.s32.totalorder %s224, %s227
      %p233 = scmp.eq.s32.totalorder %s32, 0
      %p234 = por %p232, %p233
      %p235 = scmp.ne.s32.totalorder %s224, %s227
      %p236 = scmp.eq.s32.totalorder %s37, 1
      %p237 = por %p235, %p236
      %p238 = scmp.ne.s32.totalorder %s227, %s228
      %p239 = scmp.eq.s32.totalorder %s37, 0
      %p240 = por %p238, %p239
      %p241 = scmp.ne.s32.totalorder %s227, %s228
      %p242 = scmp.eq.s32.totalorder %s38, 1
      %p243 = por %p241, %p242
      %p245 = scmp.ne.s32.totalorder %s228, %s244
      %p246 = scmp.eq.s32.totalorder %s38, 0
      %p247 = por %p245, %p246
      %s248 = ssub.s32 %s32, %s39
      %p249 = scmp.eq.s32.totalorder %s248, 0
      %s251 = sadd.s32 %s250, 1
      %s252 = scalar_select %p249, %s250, %s251
      %p255 = pneg %p249
      %p256 = scmp.eq.s32.totalorder %s32, 1
      %p257 = por %p255, %p256
      %p258 = scmp.ne.s32.totalorder %s250, %s253
      %p259 = scmp.eq.s32.totalorder %s32, 0
      %p260 = por %p258, %p259
      %p261 = scmp.ne.s32.totalorder %s250, %s253
      %p262 = scmp.eq.s32.totalorder %s37, 1
      %p263 = por %p261, %p262
      %p264 = scmp.ne.s32.totalorder %s253, %s254
      %p265 = scmp.eq.s32.totalorder %s37, 0
      %p266 = por %p264, %p265
      %p267 = scmp.ne.s32.totalorder %s253, %s254
      %p268 = scmp.eq.s32.totalorder %s38, 1
      %p269 = por %p267, %p268
      %p271 = scmp.ne.s32.totalorder %s254, %s270
      %p272 = scmp.eq.s32.totalorder %s38, 0
      %p273 = por %p271, %p272
      %s275 = sadd.s32 %s274, 1
      %p278 = scmp.eq.s32.totalorder %s32, 1
      %p279 = scmp.ne.s32.totalorder %s274, %s276
      %p280 = scmp.eq.s32.totalorder %s32, 0
      %p281 = por %p279, %p280
      %p282 = scmp.ne.s32.totalorder %s274, %s276
      %p283 = scmp.eq.s32.totalorder %s37, 1
      %p284 = por %p282, %p283
      %p285 = scmp.ne.s32.totalorder %s276, %s277
      %p286 = scmp.eq.s32.totalorder %s37, 0
      %p287 = por %p285, %p286
      %p288 = scmp.ne.s32.totalorder %s276, %s277
      %p289 = scmp.eq.s32.totalorder %s38, 1
      %p290 = por %p288, %p289
      %p292 = scmp.ne.s32.totalorder %s277, %s291
      %p293 = scmp.eq.s32.totalorder %s38, 0
      %p294 = por %p292, %p293
      %s295 = ssub.s32 %s32, %s39
      %p296 = scmp.eq.s32.totalorder %s295, 0
      %s298 = sadd.s32 %s297, 1
      %s299 = scalar_select %p296, %s297, %s298
      %p302 = pneg %p296
      %p303 = scmp.eq.s32.totalorder %s32, 1
      %p304 = por %p302, %p303
      %p305 = scmp.ne.s32.totalorder %s297, %s300
      %p306 = scmp.eq.s32.totalorder %s32, 0
      %p307 = por %p305, %p306
      %p308 = scmp.ne.s32.totalorder %s297, %s300
      %p309 = scmp.eq.s32.totalorder %s37, 1
      %p310 = por %p308, %p309
      %p311 = scmp.ne.s32.totalorder %s300, %s301
      %p312 = scmp.eq.s32.totalorder %s37, 0
      %p313 = por %p311, %p312
      %p314 = scmp.ne.s32.totalorder %s300, %s301
      %p315 = scmp.eq.s32.totalorder %s38, 1
      %p316 = por %p314, %p315
      %p318 = scmp.ne.s32.totalorder %s301, %s317
      %p319 = scmp.eq.s32.totalorder %s38, 0
      %p320 = por %p318, %p319
      %p321 = scmp.le.s32.totalorder 1, %s32
      %p322 = scmp.lt.s32.totalorder %s32, 3
      %p323 = pnand %p321, %p322
      %p324 = pneg %p323
      // Predicated region
      $region9: #{tpu_custom_call.1} parent=5 // pred_check
        _
      $region10: #{tpu_custom_call.1} parent=5 // pred_check_branch
        %326 = sbr.rel (%p323) target = $region12
      $region11: #{tpu_custom_call.1} parent=5 // pred_region
        %s327 = ssub.s32 %s32, 1
        // Predicated region
        $region13: #{tpu_custom_call.1} parent=11 // pred_check
          %p328 = pneg %p287
        $region14: #{tpu_custom_call.1} parent=11 // pred_check_branch
          %330 = sbr.rel (%p328) target = $region16
        $region15: #{tpu_custom_call.1} parent=11 // pred_region
          _
        $region16: #{tpu_custom_call.1} parent=11 // pred_fallthru
          _
      $region12: #{tpu_custom_call.1} parent=5 // pred_fallthru
        _
      %p331 = scmp.lt.s32.totalorder %s32, 2
      // Predicated region
      $region17: #{tpu_custom_call.1} parent=5 // pred_check
        %p332 = pneg %p331
      $region18: #{tpu_custom_call.1} parent=5 // pred_check_branch
        %334 = sbr.rel (%p332) target = $region20
      $region19: #{tpu_custom_call.1} parent=5 // pred_region
        // Predicated region
        $region21: #{tpu_custom_call.1} parent=19 // pred_check
          %p335 = pneg %p52
        $region22: #{tpu_custom_call.1} parent=19 // pred_check_branch
          %337 = sbr.rel (%p335) target = $region24
        $region23: #{tpu_custom_call.1} parent=19 // pred_region
          %s338 = sand.u32 %s42, 1
          %s339 = scalar_lea.sflag [#allocation4], %s338
          %s340 = sand.u32 %s42, 1
          %s341 = smul.addr %s340, 16
          %s342 = scalar_lea.vmem [#allocation3], %s341
          %s344 = ssub.s32 256, 256
          %345 = vsyncadd %s339, %s344
          %s346 = smul.addr %s32, 2
          %s347 = smul.addr %s346, 128
          %s348 = scalar_lea.hbm %s0, %s347
          %s349 = sshll.u32 %s342, 4
          %s350 = int_to_ptr.vmem [resolvable:$true] %s349
          %355 = dma.hbm_to_vmem [thread:$0]  %s348, 256, %s350, %s339, 128, 128, 8
        $region24: #{tpu_custom_call.1} parent=19 // pred_fallthru
          _
        // Predicated region
        $region25: #{tpu_custom_call.1} parent=19 // pred_check
          %p356 = pneg %p78
        $region26: #{tpu_custom_call.1} parent=19 // pred_check_branch
          %358 = sbr.rel (%p356) target = $region28
        $region27: #{tpu_custom_call.1} parent=19 // pred_region
          %p359 = scmp.lt.s32.totalorder %s32, 1
          %s360 = scalar_select %p359, %s32, 1
          %s361 = smul.addr %s360, 4
          %s362 = scalar_lea.vmem %s1, %s361
        $region28: #{tpu_custom_call.1} parent=19 // pred_fallthru
          _
        // Predicated region
        $region29: #{tpu_custom_call.1} parent=19 // pred_check
          %p363 = pneg %p104
        $region30: #{tpu_custom_call.1} parent=19 // pred_check_branch
          %365 = sbr.rel (%p363) target = $region32
        $region31: #{tpu_custom_call.1} parent=19 // pred_region
          %p366 = scmp.lt.s32.totalorder %s32, 1
          %s367 = scalar_select %p366, %s32, 1
          %s368 = smul.addr %s367, 2
          %s369 = scalar_lea.vmem %s2, %s368
        $region32: #{tpu_custom_call.1} parent=19 // pred_fallthru
          _
        // Predicated region
        $region33: #{tpu_custom_call.1} parent=19 // pred_check
          %p370 = pneg %p130
        $region34: #{tpu_custom_call.1} parent=19 // pred_check_branch
          %372 = sbr.rel (%p370) target = $region36
        $region35: #{tpu_custom_call.1} parent=19 // pred_region
          %s373 = sand.u32 %s32, 1
          %s374 = scalar_lea.sflag [#allocation7], %s373
          %s375 = sand.u32 %s120, 1
          %s376 = smul.addr %s375, 64
          %s377 = scalar_lea.vmem [#allocation6], %s376
          %s379 = ssub.s32 1024, 1024
          %380 = vsyncadd %s374, %s379
          %s381 = smul.addr %s32, 16
          %s382 = smul.addr %s381, 64
          %s383 = scalar_lea.hbm %s3, %s382
          %s384 = sshll.u32 %s377, 4
          %s385 = int_to_ptr.vmem [resolvable:$true] %s384
          %390 = dma.hbm_to_vmem [thread:$0]  %s383, 1024, %s385, %s374, 128, 128, 8
        $region36: #{tpu_custom_call.1} parent=19 // pred_fallthru
          _
        // Predicated region
        $region37: #{tpu_custom_call.1} parent=19 // pred_check
          %p391 = pneg %p156
        $region38: #{tpu_custom_call.1} parent=19 // pred_check_branch
          %393 = sbr.rel (%p391) target = $region40
        $region39: #{tpu_custom_call.1} parent=19 // pred_region
          %s394 = sand.u32 %s32, 1
          %s395 = scalar_lea.sflag [#allocation7], %s394
          %s396 = sand.u32 %s146, 1
          %s397 = smul.addr %s396, 384
          %s398 = scalar_lea.vmem [#allocation8], %s397
          %s400 = ssub.s32 6144, 6144
          %401 = vsyncadd %s395, %s400
          %s402 = smul.addr %s32, 96
          %s403 = smul.addr %s402, 64
          %s404 = scalar_lea.hbm %s4, %s403
          %s405 = sshll.u32 %s398, 4
          %s406 = int_to_ptr.vmem [resolvable:$true] %s405
          %411 = dma.hbm_to_vmem [thread:$0]  %s404, 6144, %s406, %s395, 128, 128, 8
        $region40: #{tpu_custom_call.1} parent=19 // pred_fallthru
          _
        // Predicated region
        $region41: #{tpu_custom_call.1} parent=19 // pred_check
          %p412 = pneg %p182
        $region42: #{tpu_custom_call.1} parent=19 // pred_check_branch
          %414 = sbr.rel (%p412) target = $region44
        $region43: #{tpu_custom_call.1} parent=19 // pred_region
          %p415 = scmp.lt.s32.totalorder %s32, 1
          %s416 = scalar_select %p415, %s32, 1
          %s417 = smul.addr %s416, 2
          %s418 = smul.addr %s417, 4
          %s419 = scalar_lea.vmem %s5, %s418
        $region44: #{tpu_custom_call.1} parent=19 // pred_fallthru
          _
        // Predicated region
        $region45: #{tpu_custom_call.1} parent=19 // pred_check
          %p420 = pneg %p208
        $region46: #{tpu_custom_call.1} parent=19 // pred_check_branch
          %422 = sbr.rel (%p420) target = $region48
        $region47: #{tpu_custom_call.1} parent=19 // pred_region
          %s423 = sand.u32 %s32, 1
          %s424 = scalar_lea.sflag [#allocation10], %s423
          %s425 = sand.u32 %s198, 1
          %s426 = smul.addr %s425, 192
          %s427 = scalar_lea.vmem [#allocation9], %s426
          %s429 = ssub.s32 3072, 3072
          %430 = vsyncadd %s424, %s429
          %s431 = smul.addr %s32, 24
          %s432 = smul.addr %s431, 128
          %s433 = scalar_lea.hbm %s6, %s432
          %s434 = sshll.u32 %s427, 4
          %s435 = int_to_ptr.vmem [resolvable:$true] %s434
          %440 = dma.hbm_to_vmem [thread:$0]  %s433, 3072, %s435, %s424, 128, 128, 8
        $region48: #{tpu_custom_call.1} parent=19 // pred_fallthru
          _
        // Predicated region
        $region49: #{tpu_custom_call.1} parent=19 // pred_check
          %p441 = pneg %p234
        $region50: #{tpu_custom_call.1} parent=19 // pred_check_branch
          %443 = sbr.rel (%p441) target = $region52
        $region51: #{tpu_custom_call.1} parent=19 // pred_region
          %s444 = sand.u32 %s32, 1
          %s445 = scalar_lea.sflag [#allocation10], %s444
          %s446 = sand.u32 %s224, 1
          %s447 = smul.addr %s446, 32
          %s448 = scalar_lea.vmem [#allocation11], %s447
          %s450 = ssub.s32 512, 512
          %451 = vsyncadd %s445, %s450
          %s452 = smul.addr %s32, 4
          %s453 = smul.addr %s452, 128
          %s454 = scalar_lea.hbm %s7, %s453
          %s455 = sshll.u32 %s448, 4
          %s456 = int_to_ptr.vmem [resolvable:$true] %s455
          %461 = dma.hbm_to_vmem [thread:$0]  %s454, 512, %s456, %s445, 128, 128, 8
        $region52: #{tpu_custom_call.1} parent=19 // pred_fallthru
          _
        // Predicated region
        $region53: #{tpu_custom_call.1} parent=19 // pred_check
          %p462 = pneg %p260
        $region54: #{tpu_custom_call.1} parent=19 // pred_check_branch
          %464 = sbr.rel (%p462) target = $region56
        $region55: #{tpu_custom_call.1} parent=19 // pred_region
          %s465 = sand.u32 %s250, 1
          %s466 = scalar_lea.sflag [#allocation13], %s465
          %s467 = sand.u32 %s250, 1
          %s468 = smul.addr %s467, 48
          %s469 = scalar_lea.vmem [#allocation12], %s468
          %s471 = ssub.s32 768, 768
          %472 = vsyncadd %s466, %s471
          %s473 = smul.addr %s32, 6
          %s474 = smul.addr %s473, 128
          %s475 = scalar_lea.hbm %s8, %s474
          %s476 = sshll.u32 %s469, 4
          %s477 = int_to_ptr.vmem [resolvable:$true] %s476
          %482 = dma.hbm_to_vmem [thread:$0]  %s475, 768, %s477, %s466, 128, 128, 8
        $region56: #{tpu_custom_call.1} parent=19 // pred_fallthru
          _
      $region20: #{tpu_custom_call.1} parent=5 // pred_fallthru
        _
      %p483 = scmp.le.s32.totalorder 1, %s32
      %p484 = scmp.lt.s32.totalorder %s32, 3
      %p485 = pnand %p483, %p484
      %p486 = pneg %p485
      // Predicated region
      $region57: #{tpu_custom_call.1} parent=5 // pred_check
        _
      $region58: #{tpu_custom_call.1} parent=5 // pred_check_branch
        %488 = sbr.rel (%p485) target = $region60
      $region59: #{tpu_custom_call.1} parent=5 // pred_region
        %s489 = ssub.s32 %s32, 1
        %s490 = sand.u32 %s45, 1
        %s491 = scalar_lea.sflag [#allocation4], %s490
        %s492 = sand.u32 %s45, 1
        %s493 = smul.addr %s492, 16
        %s494 = scalar_lea.vmem [#allocation3], %s493
        // Predicated region
        $region61: #{tpu_custom_call.1} parent=59 // pred_check
          %p495 = pneg %p58
        $region62: #{tpu_custom_call.1} parent=59 // pred_check_branch
          %497 = sbr.rel (%p495) target = $region64
        $region63: #{tpu_custom_call.1} parent=59 // pred_region
          %498 = dma.done %s491, 256
        $region64: #{tpu_custom_call.1} parent=59 // pred_fallthru
          _
        %s499 = sand.u32 %s37, 1
        %s500 = scalar_lea.sflag [#allocation7], %s499
        %s501 = sand.u32 %s123, 1
        %s502 = smul.addr %s501, 64
        %s503 = scalar_lea.vmem [#allocation6], %s502
        // Predicated region
        $region65: #{tpu_custom_call.1} parent=59 // pred_check
          %p504 = pneg %p136
        $region66: #{tpu_custom_call.1} parent=59 // pred_check_branch
          %506 = sbr.rel (%p504) target = $region68
        $region67: #{tpu_custom_call.1} parent=59 // pred_region
          %507 = dma.done %s500, 1024
        $region68: #{tpu_custom_call.1} parent=59 // pred_fallthru
          _
        %s508 = sand.u32 %s37, 1
        %s509 = scalar_lea.sflag [#allocation7], %s508
        %s510 = sand.u32 %s149, 1
        %s511 = smul.addr %s510, 384
        %s512 = scalar_lea.vmem [#allocation8], %s511
        // Predicated region
        $region69: #{tpu_custom_call.1} parent=59 // pred_check
          %p513 = pneg %p162
        $region70: #{tpu_custom_call.1} parent=59 // pred_check_branch
          %515 = sbr.rel (%p513) target = $region72
        $region71: #{tpu_custom_call.1} parent=59 // pred_region
          %516 = dma.done %s509, 6144
        $region72: #{tpu_custom_call.1} parent=59 // pred_fallthru
          _
        %s517 = sand.u32 %s37, 1
        %s518 = scalar_lea.sflag [#allocation10], %s517
        %s519 = sand.u32 %s201, 1
        %s520 = smul.addr %s519, 192
        %s521 = scalar_lea.vmem [#allocation9], %s520
        // Predicated region
        $region73: #{tpu_custom_call.1} parent=59 // pred_check
          %p522 = pneg %p214
        $region74: #{tpu_custom_call.1} parent=59 // pred_check_branch
          %524 = sbr.rel (%p522) target = $region76
        $region75: #{tpu_custom_call.1} parent=59 // pred_region
          %525 = dma.done %s518, 3072
        $region76: #{tpu_custom_call.1} parent=59 // pred_fallthru
          _
        %s526 = sand.u32 %s37, 1
        %s527 = scalar_lea.sflag [#allocation10], %s526
        %s528 = sand.u32 %s227, 1
        %s529 = smul.addr %s528, 32
        %s530 = scalar_lea.vmem [#allocation11], %s529
        // Predicated region
        $region77: #{tpu_custom_call.1} parent=59 // pred_check
          %p531 = pneg %p240
        $region78: #{tpu_custom_call.1} parent=59 // pred_check_branch
          %533 = sbr.rel (%p531) target = $region80
        $region79: #{tpu_custom_call.1} parent=59 // pred_region
          %534 = dma.done %s527, 512
        $region80: #{tpu_custom_call.1} parent=59 // pred_fallthru
          _
        %s535 = sand.u32 %s253, 1
        %s536 = scalar_lea.sflag [#allocation13], %s535
        %s537 = sand.u32 %s253, 1
        %s538 = smul.addr %s537, 48
        %s539 = scalar_lea.vmem [#allocation12], %s538
        // Predicated region
        $region81: #{tpu_custom_call.1} parent=59 // pred_check
          %p540 = pneg %p266
        $region82: #{tpu_custom_call.1} parent=59 // pred_check_branch
          %542 = sbr.rel (%p540) target = $region84
        $region83: #{tpu_custom_call.1} parent=59 // pred_region
          %543 = dma.done %s536, 768
        $region84: #{tpu_custom_call.1} parent=59 // pred_fallthru
          _
        %s544 = sand.u32 %s45, 1
        %s545 = scalar_lea.sflag [#allocation4], %s544
        %s546 = sand.u32 %s45, 1
        %s547 = smul.addr %s546, 16
        %s548 = scalar_lea.vmem [#allocation3], %s547
        %p549 = pneg %p58
        %p550 = pneg %p55
        %p551 = scmp.lt.s32.totalorder %s37, 1
        %s552 = scalar_select %p551, %s37, 1
        %s553 = smul.addr %s552, 4
        %s554 = scalar_lea.vmem %s1, %s553
        %p555 = pneg %p84
        %p556 = pneg %p81
        %p557 = scmp.lt.s32.totalorder %s37, 1
        %s558 = scalar_select %p557, %s37, 1
        %s559 = smul.addr %s558, 2
        %s560 = scalar_lea.vmem %s2, %s559
        %p561 = pneg %p110
        %p562 = pneg %p107
        %s563 = sand.u32 %s37, 1
        %s564 = scalar_lea.sflag [#allocation7], %s563
        %s565 = sand.u32 %s123, 1
        %s566 = smul.addr %s565, 64
        %s567 = scalar_lea.vmem [#allocation6], %s566
        %p568 = pneg %p136
        %p569 = pneg %p133
        %s570 = sand.u32 %s37, 1
        %s571 = scalar_lea.sflag [#allocation7], %s570
        %s572 = sand.u32 %s149, 1
        %s573 = smul.addr %s572, 384
        %s574 = scalar_lea.vmem [#allocation8], %s573
        %p575 = pneg %p162
        %p576 = pneg %p159
        %p577 = scmp.lt.s32.totalorder %s37, 1
        %s578 = scalar_select %p577, %s37, 1
        %s579 = smul.addr %s578, 2
        %s580 = smul.addr %s579, 4
        %s581 = scalar_lea.vmem %s5, %s580
        %p582 = pneg %p188
        %p583 = pneg %p185
        %s584 = sand.u32 %s37, 1
        %s585 = scalar_lea.sflag [#allocation10], %s584
        %s586 = sand.u32 %s201, 1
        %s587 = smul.addr %s586, 192
        %s588 = scalar_lea.vmem [#allocation9], %s587
        %p589 = pneg %p214
        %p590 = pneg %p211
        %s591 = sand.u32 %s37, 1
        %s592 = scalar_lea.sflag [#allocation10], %s591
        %s593 = sand.u32 %s227, 1
        %s594 = smul.addr %s593, 32
        %s595 = scalar_lea.vmem [#allocation11], %s594
        %p596 = pneg %p240
        %p597 = pneg %p237
        %s598 = sand.u32 %s253, 1
        %s599 = scalar_lea.sflag [#allocation13], %s598
        %s600 = sand.u32 %s253, 1
        %s601 = smul.addr %s600, 48
        %s602 = scalar_lea.vmem [#allocation12], %s601
        %p603 = pneg %p266
        %p604 = pneg %p263
        %p605 = pneg %p287
        %p606 = pneg %p284
        %p607 = pneg %p313
        %p608 = pneg %p310
        %s609 = sand.u32 %s300, 1
        %s610 = scalar_lea.sflag [#allocation5], %s609
        %s611 = sand.u32 %s300, 1
        %s612 = smul.addr %s611, 2
        %s613 = scalar_lea.vmem [#allocation14], %s612
        %p614 = scmp.lt.s32.totalorder %s37, 1
        %s615 = scalar_select %p614, %s37, 1
        %s616 = smul.addr %s615, 4
        %s617 = scalar_lea.vmem %s1, %s616
        %p618 = scmp.lt.s32.totalorder %s37, 1
        %s619 = scalar_select %p618, %s37, 1
        %s620 = smul.addr %s619, 2
        %s621 = scalar_lea.vmem %s2, %s620
        %p622 = scmp.lt.s32.totalorder %s37, 1
        %s623 = scalar_select %p622, %s37, 1
        %s624 = smul.addr %s623, 2
        %s625 = smul.addr %s624, 4
        %s626 = scalar_lea.vmem %s5, %s625
        %v628 = vld [vmem:[%s617] sm:$0xf]
        %v629 = vld [vmem:[%s626] sm:$0x77]
        %v630 = vld [vmem:[%s494] sm:$0xff]
        %v631 = vld [vmem:[%s494 + $0x8] sm:$0xff]
        %v632 = vlaneseq
        %v633 = vshrl.u32 %v632, 7
        %v634 = vsub.s32 0, %v633
        %v635 = vrot.slane %v628, %v634
        %v636 = vsub.f32 %v630, %v635
        %v637 = vsub.f32 %v631, %v635
        %v638 = vlaneseq
        %v639 = vshrl.u32 %v638, 7
        %v640 = vsub.s32 1, %v639
        %v641 = vrot.slane %v628, %v640
        %v642 = vmul.f32 %v636, %v641
        %v643 = vmul.f32 %v637, %v641
        %v644 = vpack.c.bf16 %v643, %v642
        %v645 = vld [vmem:[%s503] sm:$0xff]
        %v646 = vld [vmem:[%s503 + $0x8] sm:$0xff]
        %v647 = vld [vmem:[%s503 + $0x10] sm:$0xff]
        %v648 = vld [vmem:[%s503 + $0x18] sm:$0xff]
        %v649 = vld [vmem:[%s503 + $0x20] sm:$0xff]
        %v650 = vld [vmem:[%s503 + $0x28] sm:$0xff]
        %v651 = vld [vmem:[%s503 + $0x30] sm:$0xff]
        %v652 = vld [vmem:[%s503 + $0x38] sm:$0xff]
        %v654 = vlaneseq
        %v655 = vshrl.u32 %v654, 7
        %v656 = vsub.s32 0, %v655
        %v657 = vrot.slane %v629, %v656
        %v658 = vlaneseq
        %v659 = vshrl.u32 %v658, 7
        %v660 = vsub.s32 4, %v659
        %v661 = vrot.slane %v629, %v660
        %v664 = vlaneseq
        %v665 = vshrl.u32 %v664, 7
        %v666 = vsub.s32 0, %v665
        %v667 = vrot.slane %v657, %v666
        %v668 = vlaneseq
        %v669 = vshrl.u32 %v668, 7
        %v670 = vsub.s32 0, %v669
        %v671 = vrot.slane %v661, %v670
        %v680 = vunpack.c.l.b16 %v645
        %v681 = vunpack.c.h.b16 %v645
        %v682 = vunpack.c.l.b16 %v646
        %v683 = vunpack.c.h.b16 %v646
        %v684 = vunpack.c.l.b16 %v647
        %v685 = vunpack.c.h.b16 %v647
        %v686 = vunpack.c.l.b16 %v648
        %v687 = vunpack.c.h.b16 %v648
        %v688 = vunpack.c.l.b16 %v649
        %v689 = vunpack.c.h.b16 %v649
        %v690 = vunpack.c.l.b16 %v650
        %v691 = vunpack.c.h.b16 %v650
        %v692 = vunpack.c.l.b16 %v651
        %v693 = vunpack.c.h.b16 %v651
        %v694 = vunpack.c.l.b16 %v652
        %v695 = vunpack.c.h.b16 %v652
        %v696 = vpack.c.b16 %v682, %v680
        %v697 = vpack.c.b16 %v683, %v681
        %v698 = vpack.c.b16 %v686, %v684
        %v699 = vpack.c.b16 %v687, %v685
        %v700 = vpack.c.b16 %v690, %v688
        %v701 = vpack.c.b16 %v691, %v689
        %v702 = vpack.c.b16 %v694, %v692
        %v703 = vpack.c.b16 %v695, %v693
        %vm712 = vcmask 523264
        %v714 = vsel %vm712, %v644, 0
        %716 = vmatprep.subr.bf16.mxu0 %v697
        %717 = vmatpush1.bf16.msra.mxu0 %v696
        %718 = vmatprep.subr.bf16.mxu0 %v699
        %719 = vmatpush1.bf16.msra.mxu0 %v698
        %720 = vmatprep.subr.bf16.mxu0 %v701
        %721 = vmatpush1.bf16.msra.mxu0 %v700
        %722 = vmatprep.subr.bf16.mxu0 %v703
        %723 = vmatpush1.bf16.msra.mxu0 %v702
        %724 = vmatprep.subr.bf16.mxu0 0
        %725 = vmatpush1.bf16.msra.mxu0 0
        %726 = vmatprep.subr.bf16.mxu0 0
        %727 = vmatpush1.bf16.msra.mxu0 0
        %728 = vmatprep.subr.bf16.mxu0 0
        %729 = vmatpush1.bf16.msra.mxu0 0
        %730 = vmatprep.subr.bf16.mxu0 0
        %731 = vmatpush1.bf16.msra.mxu0 0
        %732 = vmatprep.subr.bf16.mxu0 0
        %733 = vmatpush1.bf16.msra.mxu0 0
        %734 = vmatprep.subr.bf16.mxu0 0
        %735 = vmatpush1.bf16.msra.mxu0 0
        %736 = vmatprep.subr.bf16.mxu0 0
        %737 = vmatpush1.bf16.msra.mxu0 0
        %738 = vmatprep.subr.bf16.mxu0 0
        %739 = vmatpush1.bf16.msra.mxu0 0
        %740 = vmatprep.subr.bf16.mxu0 0
        %741 = vmatpush1.bf16.msra.mxu0 0
        %742 = vmatprep.subr.bf16.mxu0 0
        %743 = vmatpush1.bf16.msra.mxu0 0
        %744 = vmatprep.subr.bf16.mxu0 0
        %745 = vmatpush1.bf16.msra.mxu0 0
        %746 = vmatprep.subr.bf16.mxu0 0
        %747 = vmatpush1.bf16.msra.mxu0 0
        %748 = vmatprep.mubr.bf16.mxu0 0
        %749 = vmatmul.mubr.bf16.gmra.mrb[0].mxu0 %v714
        %v750 = vpop.f32.mrb[0].mxu0
        %v751 = vadd.f32 %v667, %v750
        %v752 = vpop.f32.mrb[0].mxu0
        %v753 = vadd.f32 %v671, %v752
        %v754 = vpop.f32.mrb[0].mxu0
        %v755 = vadd.f32 %v667, %v754
        %v756 = vpop.f32.mrb[0].mxu0
        %v757 = vadd.f32 %v671, %v756
        %758 = vdwg.mxu0
        %vm759 = vcmp.ge.f32.partialorder %v751, 0.0
        %vm760 = vcmp.ge.f32.partialorder %v753, 0.0
        %vm761 = vcmp.ge.f32.partialorder %v755, 0.0
        %vm762 = vcmp.ge.f32.partialorder %v757, 0.0
        %v763 = vmul.f32 %v751, 0.01
        %v764 = vmul.f32 %v753, 0.01
        %v765 = vmul.f32 %v755, 0.01
        %v766 = vmul.f32 %v757, 0.01
        %v767 = vsel %vm759, %v751, %v763
        %v768 = vsel %vm760, %v753, %v764
        %v769 = vsel %vm761, %v755, %v765
        %v770 = vsel %vm762, %v757, %v766
        %v771 = vpack.c.bf16 %v769, %v767
        %v772 = vpack.c.bf16 %v770, %v768
        %v773 = vld [vmem:[%s512] sm:$0xff]
        %v774 = vld [vmem:[%s512 + $0x8] sm:$0xff]
        %v775 = vld [vmem:[%s512 + $0x10] sm:$0xff]
        %v776 = vld [vmem:[%s512 + $0x18] sm:$0xff]
        %v777 = vld [vmem:[%s512 + $0x20] sm:$0xff]
        %v778 = vld [vmem:[%s512 + $0x28] sm:$0xff]
        %v779 = vld [vmem:[%s512 + $0x30] sm:$0xff]
        %v780 = vld [vmem:[%s512 + $0x38] sm:$0xff]
        %v781 = vld [vmem:[%s512 + $0x40] sm:$0xff]
        %v782 = vld [vmem:[%s512 + $0x48] sm:$0xff]
        %v783 = vld [vmem:[%s512 + $0x50] sm:$0xff]
        %v784 = vld [vmem:[%s512 + $0x58] sm:$0xff]
        %v785 = vld [vmem:[%s512 + $0x60] sm:$0xff]
        %v786 = vld [vmem:[%s512 + $0x68] sm:$0xff]
        %v787 = vld [vmem:[%s512 + $0x70] sm:$0xff]
        %v788 = vld [vmem:[%s512 + $0x78] sm:$0xff]
        %v789 = vld [vmem:[%s512 + $0x80] sm:$0xff]
        %v790 = vld [vmem:[%s512 + $0x88] sm:$0xff]
        %v791 = vld [vmem:[%s512 + $0x90] sm:$0xff]
        %v792 = vld [vmem:[%s512 + $0x98] sm:$0xff]
        %v793 = vld [vmem:[%s512 + $0xa0] sm:$0xff]
        %v794 = vld [vmem:[%s512 + $0xa8] sm:$0xff]
        %v795 = vld [vmem:[%s512 + $0xb0] sm:$0xff]
        %v796 = vld [vmem:[%s512 + $0xb8] sm:$0xff]
        %v797 = vlaneseq
        %v798 = vshrl.u32 %v797, 7
        %v799 = vsub.s32 1, %v798
        %v800 = vrot.slane %v629, %v799
        %v801 = vlaneseq
        %v802 = vshrl.u32 %v801, 7
        %v803 = vsub.s32 5, %v802
        %v804 = vrot.slane %v629, %v803
        %v807 = vlaneseq
        %v808 = vshrl.u32 %v807, 7
        %v809 = vsub.s32 1, %v808
        %v810 = vrot.slane %v800, %v809
        %v811 = vlaneseq
        %v812 = vshrl.u32 %v811, 7
        %v813 = vsub.s32 1, %v812
        %v814 = vrot.slane %v804, %v813
        %v839 = vunpack.c.l.b16 %v773
        %v840 = vunpack.c.h.b16 %v773
        %v841 = vunpack.c.l.b16 %v774
        %v842 = vunpack.c.h.b16 %v774
        %v843 = vunpack.c.l.b16 %v775
        %v844 = vunpack.c.h.b16 %v775
        %v845 = vunpack.c.l.b16 %v776
        %v846 = vunpack.c.h.b16 %v776
        %v847 = vunpack.c.l.b16 %v777
        %v848 = vunpack.c.h.b16 %v777
        %v849 = vunpack.c.l.b16 %v778
        %v850 = vunpack.c.h.b16 %v778
        %v851 = vunpack.c.l.b16 %v779
        %v852 = vunpack.c.h.b16 %v779
        %v853 = vunpack.c.l.b16 %v780
        %v854 = vunpack.c.h.b16 %v780
        %v855 = vunpack.c.l.b16 %v781
        %v856 = vunpack.c.h.b16 %v781
        %v857 = vunpack.c.l.b16 %v782
        %v858 = vunpack.c.h.b16 %v782
        %v859 = vunpack.c.l.b16 %v783
        %v860 = vunpack.c.h.b16 %v783
        %v861 = vunpack.c.l.b16 %v784
        %v862 = vunpack.c.h.b16 %v784
        %v863 = vunpack.c.l.b16 %v785
        %v864 = vunpack.c.h.b16 %v785
        %v865 = vunpack.c.l.b16 %v786
        %v866 = vunpack.c.h.b16 %v786
        %v867 = vunpack.c.l.b16 %v787
        %v868 = vunpack.c.h.b16 %v787
        %v869 = vunpack.c.l.b16 %v788
        %v870 = vunpack.c.h.b16 %v788
        %v871 = vunpack.c.l.b16 %v789
        %v872 = vunpack.c.h.b16 %v789
        %v873 = vunpack.c.l.b16 %v790
        %v874 = vunpack.c.h.b16 %v790
        %v875 = vunpack.c.l.b16 %v791
        %v876 = vunpack.c.h.b16 %v791
        %v877 = vunpack.c.l.b16 %v792
        %v878 = vunpack.c.h.b16 %v792
        %v879 = vunpack.c.l.b16 %v793
        %v880 = vunpack.c.h.b16 %v793
        %v881 = vunpack.c.l.b16 %v794
        %v882 = vunpack.c.h.b16 %v794
        %v883 = vunpack.c.l.b16 %v795
        %v884 = vunpack.c.h.b16 %v795
        %v885 = vunpack.c.l.b16 %v796
        %v886 = vunpack.c.h.b16 %v796
        %v887 = vpack.c.b16 %v841, %v839
        %v888 = vpack.c.b16 %v842, %v840
        %v889 = vpack.c.b16 %v845, %v843
        %v890 = vpack.c.b16 %v846, %v844
        %v891 = vpack.c.b16 %v849, %v847
        %v892 = vpack.c.b16 %v850, %v848
        %v893 = vpack.c.b16 %v853, %v851
        %v894 = vpack.c.b16 %v854, %v852
        %v895 = vpack.c.b16 %v857, %v855
        %v896 = vpack.c.b16 %v858, %v856
        %v897 = vpack.c.b16 %v861, %v859
        %v898 = vpack.c.b16 %v862, %v860
        %v899 = vpack.c.b16 %v865, %v863
        %v900 = vpack.c.b16 %v866, %v864
        %v901 = vpack.c.b16 %v869, %v867
        %v902 = vpack.c.b16 %v870, %v868
        %v903 = vpack.c.b16 %v873, %v871
        %v904 = vpack.c.b16 %v874, %v872
        %v905 = vpack.c.b16 %v877, %v875
        %v906 = vpack.c.b16 %v878, %v876
        %v907 = vpack.c.b16 %v881, %v879
        %v908 = vpack.c.b16 %v882, %v880
        %v909 = vpack.c.b16 %v885, %v883
        %v910 = vpack.c.b16 %v886, %v884
        %v936 = vsel %vm712, %v772, 0
        %938 = vmatprep.subr.bf16.mxu0 %v888
        %939 = vmatpush1.bf16.msra.mxu0 %v887
        %940 = vmatprep.subr.bf16.mxu0 %v890
        %941 = vmatpush1.bf16.msra.mxu0 %v889
        %942 = vmatprep.subr.bf16.mxu0 %v892
        %943 = vmatpush1.bf16.msra.mxu0 %v891
        %944 = vmatprep.subr.bf16.mxu0 %v894
        %945 = vmatpush1.bf16.msra.mxu0 %v893
        %946 = vmatprep.subr.bf16.mxu0 %v896
        %947 = vmatpush1.bf16.msra.mxu0 %v895
        %948 = vmatprep.subr.bf16.mxu0 %v898
        %949 = vmatpush1.bf16.msra.mxu0 %v897
        %950 = vmatprep.subr.bf16.mxu0 %v900
        %951 = vmatpush1.bf16.msra.mxu0 %v899
        %952 = vmatprep.subr.bf16.mxu0 %v902
        %953 = vmatpush1.bf16.msra.mxu0 %v901
        %954 = vmatprep.subr.bf16.mxu0 %v904
        %955 = vmatpush1.bf16.msra.mxu0 %v903
        %956 = vmatprep.subr.bf16.mxu0 %v906
        %957 = vmatpush1.bf16.msra.mxu0 %v905
        %958 = vmatprep.subr.bf16.mxu0 %v908
        %959 = vmatpush1.bf16.msra.mxu0 %v907
        %960 = vmatprep.subr.bf16.mxu0 %v910
        %961 = vmatpush1.bf16.msra.mxu0 %v909
        %962 = vmatprep.subr.bf16.mxu0 0
        %963 = vmatpush1.bf16.msra.mxu0 0
        %964 = vmatprep.subr.bf16.mxu0 0
        %965 = vmatpush1.bf16.msra.mxu0 0
        %966 = vmatprep.subr.bf16.mxu0 0
        %967 = vmatpush1.bf16.msra.mxu0 0
        %968 = vmatprep.subr.bf16.mxu0 0
        %969 = vmatpush1.bf16.msra.mxu0 0
        %970 = vmatprep.mubr.bf16.mxu0 %v936
        %971 = vmatmul.mubr.bf16.gmra.mrb[0].mxu0 %v771
        %v972 = vpop.f32.mrb[0].mxu0
        %v973 = vadd.f32 %v810, %v972
        %v974 = vpop.f32.mrb[0].mxu0
        %v975 = vadd.f32 %v814, %v974
        %v976 = vpop.f32.mrb[0].mxu0
        %v977 = vadd.f32 %v810, %v976
        %v978 = vpop.f32.mrb[0].mxu0
        %v979 = vadd.f32 %v814, %v978
        %980 = vdwg.mxu0
        %vm981 = vcmp.ge.f32.partialorder %v973, 0.0
        %vm982 = vcmp.ge.f32.partialorder %v975, 0.0
        %vm983 = vcmp.ge.f32.partialorder %v977, 0.0
        %vm984 = vcmp.ge.f32.partialorder %v979, 0.0
        %v985 = vmul.f32 %v973, 0.01
        %v986 = vmul.f32 %v975, 0.01
        %v987 = vmul.f32 %v977, 0.01
        %v988 = vmul.f32 %v979, 0.01
        %v989 = vsel %vm981, %v973, %v985
        %v990 = vsel %vm982, %v975, %v986
        %v991 = vsel %vm983, %v977, %v987
        %v992 = vsel %vm984, %v979, %v988
        %v993 = vpack.c.bf16 %v991, %v989
        %v994 = vpack.c.bf16 %v992, %v990
        %s995 = scalar_lea.vmem %s512, 192 [#allocation8]
        %v996 = vld [vmem:[%s995] sm:$0xff]
        %v997 = vld [vmem:[%s995 + $0x8] sm:$0xff]
        %v998 = vld [vmem:[%s995 + $0x10] sm:$0xff]
        %v999 = vld [vmem:[%s995 + $0x18] sm:$0xff]
        %v1000 = vld [vmem:[%s995 + $0x20] sm:$0xff]
        %v1001 = vld [vmem:[%s995 + $0x28] sm:$0xff]
        %v1002 = vld [vmem:[%s995 + $0x30] sm:$0xff]
        %v1003 = vld [vmem:[%s995 + $0x38] sm:$0xff]
        %v1004 = vld [vmem:[%s995 + $0x40] sm:$0xff]
        %v1005 = vld [vmem:[%s995 + $0x48] sm:$0xff]
        %v1006 = vld [vmem:[%s995 + $0x50] sm:$0xff]
        %v1007 = vld [vmem:[%s995 + $0x58] sm:$0xff]
        %v1008 = vld [vmem:[%s995 + $0x60] sm:$0xff]
        %v1009 = vld [vmem:[%s995 + $0x68] sm:$0xff]
        %v1010 = vld [vmem:[%s995 + $0x70] sm:$0xff]
        %v1011 = vld [vmem:[%s995 + $0x78] sm:$0xff]
        %v1012 = vld [vmem:[%s995 + $0x80] sm:$0xff]
        %v1013 = vld [vmem:[%s995 + $0x88] sm:$0xff]
        %v1014 = vld [vmem:[%s995 + $0x90] sm:$0xff]
        %v1015 = vld [vmem:[%s995 + $0x98] sm:$0xff]
        %v1016 = vld [vmem:[%s995 + $0xa0] sm:$0xff]
        %v1017 = vld [vmem:[%s995 + $0xa8] sm:$0xff]
        %v1018 = vld [vmem:[%s995 + $0xb0] sm:$0xff]
        %v1019 = vld [vmem:[%s995 + $0xb8] sm:$0xff]
        %v1020 = vlaneseq
        %v1021 = vshrl.u32 %v1020, 7
        %v1022 = vsub.s32 2, %v1021
        %v1023 = vrot.slane %v629, %v1022
        %v1024 = vlaneseq
        %v1025 = vshrl.u32 %v1024, 7
        %v1026 = vsub.s32 6, %v1025
        %v1027 = vrot.slane %v629, %v1026
        %v1030 = vlaneseq
        %v1031 = vshrl.u32 %v1030, 7
        %v1032 = vsub.s32 2, %v1031
        %v1033 = vrot.slane %v1023, %v1032
        %v1034 = vlaneseq
        %v1035 = vshrl.u32 %v1034, 7
        %v1036 = vsub.s32 2, %v1035
        %v1037 = vrot.slane %v1027, %v1036
        %v1062 = vunpack.c.l.b16 %v996
        %v1063 = vunpack.c.h.b16 %v996
        %v1064 = vunpack.c.l.b16 %v997
        %v1065 = vunpack.c.h.b16 %v997
        %v1066 = vunpack.c.l.b16 %v998
        %v1067 = vunpack.c.h.b16 %v998
        %v1068 = vunpack.c.l.b16 %v999
        %v1069 = vunpack.c.h.b16 %v999
        %v1070 = vunpack.c.l.b16 %v1000
        %v1071 = vunpack.c.h.b16 %v1000
        %v1072 = vunpack.c.l.b16 %v1001
        %v1073 = vunpack.c.h.b16 %v1001
        %v1074 = vunpack.c.l.b16 %v1002
        %v1075 = vunpack.c.h.b16 %v1002
        %v1076 = vunpack.c.l.b16 %v1003
        %v1077 = vunpack.c.h.b16 %v1003
        %v1078 = vunpack.c.l.b16 %v1004
        %v1079 = vunpack.c.h.b16 %v1004
        %v1080 = vunpack.c.l.b16 %v1005
        %v1081 = vunpack.c.h.b16 %v1005
        %v1082 = vunpack.c.l.b16 %v1006
        %v1083 = vunpack.c.h.b16 %v1006
        %v1084 = vunpack.c.l.b16 %v1007
        %v1085 = vunpack.c.h.b16 %v1007
        %v1086 = vunpack.c.l.b16 %v1008
        %v1087 = vunpack.c.h.b16 %v1008
        %v1088 = vunpack.c.l.b16 %v1009
        %v1089 = vunpack.c.h.b16 %v1009
        %v1090 = vunpack.c.l.b16 %v1010
        %v1091 = vunpack.c.h.b16 %v1010
        %v1092 = vunpack.c.l.b16 %v1011
        %v1093 = vunpack.c.h.b16 %v1011
        %v1094 = vunpack.c.l.b16 %v1012
        %v1095 = vunpack.c.h.b16 %v1012
        %v1096 = vunpack.c.l.b16 %v1013
        %v1097 = vunpack.c.h.b16 %v1013
        %v1098 = vunpack.c.l.b16 %v1014
        %v1099 = vunpack.c.h.b16 %v1014
        %v1100 = vunpack.c.l.b16 %v1015
        %v1101 = vunpack.c.h.b16 %v1015
        %v1102 = vunpack.c.l.b16 %v1016
        %v1103 = vunpack.c.h.b16 %v1016
        %v1104 = vunpack.c.l.b16 %v1017
        %v1105 = vunpack.c.h.b16 %v1017
        %v1106 = vunpack.c.l.b16 %v1018
        %v1107 = vunpack.c.h.b16 %v1018
        %v1108 = vunpack.c.l.b16 %v1019
        %v1109 = vunpack.c.h.b16 %v1019
        %v1110 = vpack.c.b16 %v1064, %v1062
        %v1111 = vpack.c.b16 %v1065, %v1063
        %v1112 = vpack.c.b16 %v1068, %v1066
        %v1113 = vpack.c.b16 %v1069, %v1067
        %v1114 = vpack.c.b16 %v1072, %v1070
        %v1115 = vpack.c.b16 %v1073, %v1071
        %v1116 = vpack.c.b16 %v1076, %v1074
        %v1117 = vpack.c.b16 %v1077, %v1075
        %v1118 = vpack.c.b16 %v1080, %v1078
        %v1119 = vpack.c.b16 %v1081, %v1079
        %v1120 = vpack.c.b16 %v1084, %v1082
        %v1121 = vpack.c.b16 %v1085, %v1083
        %v1122 = vpack.c.b16 %v1088, %v1086
        %v1123 = vpack.c.b16 %v1089, %v1087
        %v1124 = vpack.c.b16 %v1092, %v1090
        %v1125 = vpack.c.b16 %v1093, %v1091
        %v1126 = vpack.c.b16 %v1096, %v1094
        %v1127 = vpack.c.b16 %v1097, %v1095
        %v1128 = vpack.c.b16 %v1100, %v1098
        %v1129 = vpack.c.b16 %v1101, %v1099
        %v1130 = vpack.c.b16 %v1104, %v1102
        %v1131 = vpack.c.b16 %v1105, %v1103
        %v1132 = vpack.c.b16 %v1108, %v1106
        %v1133 = vpack.c.b16 %v1109, %v1107
        %v1159 = vsel %vm712, %v994, 0
        %1161 = vmatprep.subr.bf16.mxu0 %v1111
        %1162 = vmatpush1.bf16.msra.mxu0 %v1110
        %1163 = vmatprep.subr.bf16.mxu0 %v1113
        %1164 = vmatpush1.bf16.msra.mxu0 %v1112
        %1165 = vmatprep.subr.bf16.mxu0 %v1115
        %1166 = vmatpush1.bf16.msra.mxu0 %v1114
        %1167 = vmatprep.subr.bf16.mxu0 %v1117
        %1168 = vmatpush1.bf16.msra.mxu0 %v1116
        %1169 = vmatprep.subr.bf16.mxu0 %v1119
        %1170 = vmatpush1.bf16.msra.mxu0 %v1118
        %1171 = vmatprep.subr.bf16.mxu0 %v1121
        %1172 = vmatpush1.bf16.msra.mxu0 %v1120
        %1173 = vmatprep.subr.bf16.mxu0 %v1123
        %1174 = vmatpush1.bf16.msra.mxu0 %v1122
        %1175 = vmatprep.subr.bf16.mxu0 %v1125
        %1176 = vmatpush1.bf16.msra.mxu0 %v1124
        %1177 = vmatprep.subr.bf16.mxu0 %v1127
        %1178 = vmatpush1.bf16.msra.mxu0 %v1126
        %1179 = vmatprep.subr.bf16.mxu0 %v1129
        %1180 = vmatpush1.bf16.msra.mxu0 %v1128
        %1181 = vmatprep.subr.bf16.mxu0 %v1131
        %1182 = vmatpush1.bf16.msra.mxu0 %v1130
        %1183 = vmatprep.subr.bf16.mxu0 %v1133
        %1184 = vmatpush1.bf16.msra.mxu0 %v1132
        %1185 = vmatprep.subr.bf16.mxu0 0
        %1186 = vmatpush1.bf16.msra.mxu0 0
        %1187 = vmatprep.subr.bf16.mxu0 0
        %1188 = vmatpush1.bf16.msra.mxu0 0
        %1189 = vmatprep.subr.bf16.mxu0 0
        %1190 = vmatpush1.bf16.msra.mxu0 0
        %1191 = vmatprep.subr.bf16.mxu0 0
        %1192 = vmatpush1.bf16.msra.mxu0 0
        %1193 = vmatprep.mubr.bf16.mxu0 %v1159
        %1194 = vmatmul.mubr.bf16.gmra.mrb[0].mxu0 %v993
        %v1195 = vpop.f32.mrb[0].mxu0
        %v1196 = vadd.f32 %v1033, %v1195
        %v1197 = vpop.f32.mrb[0].mxu0
        %v1198 = vadd.f32 %v1037, %v1197
        %v1199 = vpop.f32.mrb[0].mxu0
        %v1200 = vadd.f32 %v1033, %v1199
        %v1201 = vpop.f32.mrb[0].mxu0
        %v1202 = vadd.f32 %v1037, %v1201
        %1203 = vdwg.mxu0
        %vm1204 = vcmp.ge.f32.partialorder %v1196, 0.0
        %vm1205 = vcmp.ge.f32.partialorder %v1198, 0.0
        %vm1206 = vcmp.ge.f32.partialorder %v1200, 0.0
        %vm1207 = vcmp.ge.f32.partialorder %v1202, 0.0
        %v1208 = vmul.f32 %v1196, 0.01
        %v1209 = vmul.f32 %v1198, 0.01
        %v1210 = vmul.f32 %v1200, 0.01
        %v1211 = vmul.f32 %v1202, 0.01
        %v1212 = vsel %vm1204, %v1196, %v1208
        %v1213 = vsel %vm1205, %v1198, %v1209
        %v1214 = vsel %vm1206, %v1200, %v1210
        %v1215 = vsel %vm1207, %v1202, %v1211
        %v1216 = vld [vmem:[%s521] sm:$0xff]
        %v1217 = vld [vmem:[%s521 + $0x8] sm:$0xff]
        %v1218 = vld [vmem:[%s521 + $0x10] sm:$0xff]
        %v1219 = vld [vmem:[%s521 + $0x18] sm:$0xff]
        %v1220 = vld [vmem:[%s521 + $0x20] sm:$0xff]
        %v1221 = vld [vmem:[%s521 + $0x28] sm:$0xff]
        %v1222 = vld [vmem:[%s521 + $0x30] sm:$0xff]
        %v1223 = vld [vmem:[%s521 + $0x38] sm:$0xff]
        %v1224 = vld [vmem:[%s521 + $0x40] sm:$0xff]
        %v1225 = vld [vmem:[%s521 + $0x48] sm:$0xff]
        %v1226 = vld [vmem:[%s521 + $0x50] sm:$0xff]
        %v1227 = vld [vmem:[%s521 + $0x58] sm:$0xff]
        %v1228 = vld [vmem:[%s521 + $0x60] sm:$0xff]
        %v1229 = vld [vmem:[%s521 + $0x68] sm:$0xff]
        %v1230 = vld [vmem:[%s521 + $0x70] sm:$0xff]
        %v1231 = vld [vmem:[%s521 + $0x78] sm:$0xff]
        %v1232 = vld [vmem:[%s521 + $0x80] sm:$0xff]
        %v1233 = vld [vmem:[%s521 + $0x88] sm:$0xff]
        %v1234 = vld [vmem:[%s521 + $0x90] sm:$0xff]
        %v1235 = vld [vmem:[%s521 + $0x98] sm:$0xff]
        %v1236 = vld [vmem:[%s521 + $0xa0] sm:$0xff]
        %v1237 = vld [vmem:[%s521 + $0xa8] sm:$0xff]
        %v1238 = vld [vmem:[%s521 + $0xb0] sm:$0xff]
        %v1239 = vld [vmem:[%s521 + $0xb8] sm:$0xff]
        %v1240 = vlaneseq
        %v1241 = vshrl.u32 %v1240, 7
        %v1242 = vsub.s32 2, %v1241
        %v1243 = vrot.slane %v628, %v1242
        %v1245 = vsel %vm712, %v1213, 0
        %v1248 = vsel %vm712, %v1215, 0
        %1250 = vmatprep.subr.mxu0 0.0
        %1251 = vmatpush1.msra.mxu0 %v1216
        %1252 = vmatprep.subr.mxu0 0.0
        %1253 = vmatpush1.msra.mxu0 %v1217
        %1254 = vmatprep.subr.mxu0 0.0
        %1255 = vmatpush1.msra.mxu0 %v1218
        %1256 = vmatprep.subr.mxu0 0.0
        %1257 = vmatpush1.msra.mxu0 %v1219
        %1258 = vmatprep.subr.mxu0 0.0
        %1259 = vmatpush1.msra.mxu0 %v1220
        %1260 = vmatprep.subr.mxu0 0.0
        %1261 = vmatpush1.msra.mxu0 %v1221
        %1262 = vmatprep.subr.mxu0 0.0
        %1263 = vmatpush1.msra.mxu0 %v1222
        %1264 = vmatprep.subr.mxu0 0.0
        %1265 = vmatpush1.msra.mxu0 %v1223
        %1266 = vmatprep.subr.mxu0 0.0
        %1267 = vmatpush1.msra.mxu0 %v1224
        %1268 = vmatprep.subr.mxu0 0.0
        %1269 = vmatpush1.msra.mxu0 %v1225
        %1270 = vmatprep.subr.mxu0 0.0
        %1271 = vmatpush1.msra.mxu0 %v1226
        %1272 = vmatprep.subr.mxu0 0.0
        %1273 = vmatpush1.msra.mxu0 %v1227
        %1274 = vmatprep.subr.mxu0 0.0
        %1275 = vmatpush1.msra.mxu0 %v1228
        %1276 = vmatprep.subr.mxu0 0.0
        %1277 = vmatpush1.msra.mxu0 %v1229
        %1278 = vmatprep.subr.mxu0 0.0
        %1279 = vmatpush1.msra.mxu0 %v1230
        %1280 = vmatprep.subr.mxu0 0.0
        %1281 = vmatpush1.msra.mxu0 %v1231
        %1282 = vmatprep.subr.mxu0 0.0
        %1283 = vmatpush1.msra.mxu0 %v1232
        %1284 = vmatprep.subr.mxu0 0.0
        %1285 = vmatpush1.msra.mxu0 %v1233
        %1286 = vmatprep.subr.mxu0 0.0
        %1287 = vmatpush1.msra.mxu0 %v1234
        %1288 = vmatprep.subr.mxu0 0.0
        %1289 = vmatpush1.msra.mxu0 %v1235
        %1290 = vmatprep.subr.mxu0 0.0
        %1291 = vmatpush1.msra.mxu0 %v1236
        %1292 = vmatprep.subr.mxu0 0.0
        %1293 = vmatpush1.msra.mxu0 %v1237
        %1294 = vmatprep.subr.mxu0 0.0
        %1295 = vmatpush1.msra.mxu0 %v1238
        %1296 = vmatprep.subr.mxu0 0.0
        %1297 = vmatpush1.msra.mxu0 %v1239
        %1298 = vmatprep.subr.mxu0 0.0
        %1299 = vmatpush1.msra.mxu0 0.0
        %1300 = vmatprep.subr.mxu0 0.0
        %1301 = vmatpush1.msra.mxu0 0.0
        %1302 = vmatprep.subr.mxu0 0.0
        %1303 = vmatpush1.msra.mxu0 0.0
        %1304 = vmatprep.subr.mxu0 0.0
        %1305 = vmatpush1.msra.mxu0 0.0
        %1306 = vmatprep.subr.mxu0 0.0
        %1307 = vmatpush1.msra.mxu0 0.0
        %1308 = vmatprep.subr.mxu0 0.0
        %1309 = vmatpush1.msra.mxu0 0.0
        %1310 = vmatprep.subr.mxu0 0.0
        %1311 = vmatpush1.msra.mxu0 0.0
        %1312 = vmatprep.subr.mxu0 0.0
        %1313 = vmatpush1.msra.mxu0 0.0
        %1314 = vmatprep.mubr.f32.mxu0 %v1245
        %1315 = vmatmul.mubr.f32.gmra.mrb[0].mxu0 %v1212
        %v1316 = vpop.f32.mrb[0].mxu0
        %v1317 = vadd.f32 %v1243, %v1316
        %v1318 = vpop.f32.mrb[0].mxu0
        %1319 = vmatprep.mubr.f32.mxu0 %v1248
        %1320 = vmatmul.mubr.f32.gmra.mrb[0].mxu0 %v1214
        %v1321 = vpop.f32.mrb[0].mxu0
        %v1322 = vadd.f32 %v1243, %v1321
        %v1323 = vpop.f32.mrb[0].mxu0
        %1324 = vdwg.mxu0
        %v1325 = vmax.f32 %v1317, 0.0
        %v1326 = vmax.f32 %v1322, 0.0
        %v1327 = vld [vmem:[%s530] sm:$0xff]
        %v1328 = vld [vmem:[%s530 + $0x8] sm:$0xff]
        %v1329 = vld [vmem:[%s539] sm:$0xff]
        %v1330 = vld [vmem:[%s539 + $0x8] sm:$0xff]
        %vm1331 = vcmask 130048
        %v1333 = vsel %vm1331, %v1327, 0
        %v1336 = vsel %vm1331, %v1328, 0
        %1338 = vmatprep.subr.mxu0 0.0
        %1339 = vmatpush1.msra.mxu0 %v1325
        %1340 = vmatprep.subr.mxu0 0.0
        %1341 = vmatpush1.msra.mxu0 %v1326
        %1342 = vmatprep.subr.mxu0 0.0
        %1343 = vmatpush1.msra.mxu0 0.0
        %1344 = vmatprep.subr.mxu0 0.0
        %1345 = vmatpush1.msra.mxu0 0.0
        %1346 = vmatprep.subr.mxu0 0.0
        %1347 = vmatpush1.msra.mxu0 0.0
        %1348 = vmatprep.subr.mxu0 0.0
        %1349 = vmatpush1.msra.mxu0 0.0
        %1350 = vmatprep.subr.mxu0 0.0
        %1351 = vmatpush1.msra.mxu0 0.0
        %1352 = vmatprep.subr.mxu0 0.0
        %1353 = vmatpush1.msra.mxu0 0.0
        %1354 = vmatprep.subr.mxu0 0.0
        %1355 = vmatpush1.msra.mxu0 0.0
        %1356 = vmatprep.subr.mxu0 0.0
        %1357 = vmatpush1.msra.mxu0 0.0
        %1358 = vmatprep.subr.mxu0 0.0
        %1359 = vmatpush1.msra.mxu0 0.0
        %1360 = vmatprep.subr.mxu0 0.0
        %1361 = vmatpush1.msra.mxu0 0.0
        %1362 = vmatprep.subr.mxu0 0.0
        %1363 = vmatpush1.msra.mxu0 0.0
        %1364 = vmatprep.subr.mxu0 0.0
        %1365 = vmatpush1.msra.mxu0 0.0
        %1366 = vmatprep.subr.mxu0 0.0
        %1367 = vmatpush1.msra.mxu0 0.0
        %1368 = vmatprep.subr.mxu0 0.0
        %1369 = vmatpush1.msra.mxu0 0.0
        %1370 = vmatprep.subr.mxu0 0.0
        %1371 = vmatpush1.msra.mxu0 0.0
        %1372 = vmatprep.subr.mxu0 0.0
        %1373 = vmatpush1.msra.mxu0 0.0
        %1374 = vmatprep.subr.mxu0 0.0
        %1375 = vmatpush1.msra.mxu0 0.0
        %1376 = vmatprep.subr.mxu0 0.0
        %1377 = vmatpush1.msra.mxu0 0.0
        %1378 = vmatprep.subr.mxu0 0.0
        %1379 = vmatpush1.msra.mxu0 0.0
        %1380 = vmatprep.subr.mxu0 0.0
        %1381 = vmatpush1.msra.mxu0 0.0
        %1382 = vmatprep.subr.mxu0 0.0
        %1383 = vmatpush1.msra.mxu0 0.0
        %1384 = vmatprep.subr.mxu0 0.0
        %1385 = vmatpush1.msra.mxu0 0.0
        %1386 = vmatprep.subr.mxu0 0.0
        %1387 = vmatpush1.msra.mxu0 0.0
        %1388 = vmatprep.subr.mxu0 0.0
        %1389 = vmatpush1.msra.mxu0 0.0
        %1390 = vmatprep.subr.mxu0 0.0
        %1391 = vmatpush1.msra.mxu0 0.0
        %1392 = vmatprep.subr.mxu0 0.0
        %1393 = vmatpush1.msra.mxu0 0.0
        %1394 = vmatprep.subr.mxu0 0.0
        %1395 = vmatpush1.msra.mxu0 0.0
        %1396 = vmatprep.subr.mxu0 0.0
        %1397 = vmatpush1.msra.mxu0 0.0
        %1398 = vmatprep.subr.mxu0 0.0
        %1399 = vmatpush1.msra.mxu0 0.0
        %1400 = vmatprep.subr.mxu0 0.0
        %1401 = vmatpush1.msra.mxu0 0.0
        %1402 = vmatprep.mubr.f32.mxu0 0.0
        %1403 = vmatmul.mubr.f32.gmra.mrb[0].mxu0 %v1333
        %v1404 = vpop.f32.mrb[0].mxu0
        %v1405 = vadd.f32 %v1329, %v1404
        %v1406 = vpop.f32.mrb[0].mxu0
        %1407 = vmatprep.mubr.f32.mxu0 0.0
        %1408 = vmatmul.mubr.f32.gmra.mrb[0].mxu0 %v1336
        %v1409 = vpop.f32.mrb[0].mxu0
        %v1410 = vadd.f32 %v1330, %v1409
        %v1411 = vpop.f32.mrb[0].mxu0
        %1412 = vdwg.mxu0
        %vm1413 = vcmp.ge.f32.partialorder %v1405, 0.0
        %vm1414 = vcmp.ge.f32.partialorder %v1410, 0.0
        %v1415 = vmul.f32 %v1405, 0.01
        %v1416 = vmul.f32 %v1410, 0.01
        %v1417 = vsel %vm1413, %v1405, %v1415
        %v1418 = vsel %vm1414, %v1410, %v1416
        %s1419 = scalar_lea.vmem %s530, 16 [#allocation11]
        %v1420 = vld [vmem:[%s1419] sm:$0xff]
        %v1421 = vld [vmem:[%s1419 + $0x8] sm:$0xff]
        %s1422 = scalar_lea.vmem %s539, 16 [#allocation12]
        %v1423 = vld [vmem:[%s1422] sm:$0xff]
        %v1424 = vld [vmem:[%s1422 + $0x8] sm:$0xff]
        %v1426 = vsel %vm1331, %v1420, 0
        %v1429 = vsel %vm1331, %v1421, 0
        %1431 = vmatprep.subr.mxu0 0.0
        %1432 = vmatpush1.msra.mxu0 %v1417
        %1433 = vmatprep.subr.mxu0 0.0
        %1434 = vmatpush1.msra.mxu0 %v1418
        %1435 = vmatprep.subr.mxu0 0.0
        %1436 = vmatpush1.msra.mxu0 0.0
        %1437 = vmatprep.subr.mxu0 0.0
        %1438 = vmatpush1.msra.mxu0 0.0
        %1439 = vmatprep.subr.mxu0 0.0
        %1440 = vmatpush1.msra.mxu0 0.0
        %1441 = vmatprep.subr.mxu0 0.0
        %1442 = vmatpush1.msra.mxu0 0.0
        %1443 = vmatprep.subr.mxu0 0.0
        %1444 = vmatpush1.msra.mxu0 0.0
        %1445 = vmatprep.subr.mxu0 0.0
        %1446 = vmatpush1.msra.mxu0 0.0
        %1447 = vmatprep.subr.mxu0 0.0
        %1448 = vmatpush1.msra.mxu0 0.0
        %1449 = vmatprep.subr.mxu0 0.0
        %1450 = vmatpush1.msra.mxu0 0.0
        %1451 = vmatprep.subr.mxu0 0.0
        %1452 = vmatpush1.msra.mxu0 0.0
        %1453 = vmatprep.subr.mxu0 0.0
        %1454 = vmatpush1.msra.mxu0 0.0
        %1455 = vmatprep.subr.mxu0 0.0
        %1456 = vmatpush1.msra.mxu0 0.0
        %1457 = vmatprep.subr.mxu0 0.0
        %1458 = vmatpush1.msra.mxu0 0.0
        %1459 = vmatprep.subr.mxu0 0.0
        %1460 = vmatpush1.msra.mxu0 0.0
        %1461 = vmatprep.subr.mxu0 0.0
        %1462 = vmatpush1.msra.mxu0 0.0
        %1463 = vmatprep.subr.mxu0 0.0
        %1464 = vmatpush1.msra.mxu0 0.0
        %1465 = vmatprep.subr.mxu0 0.0
        %1466 = vmatpush1.msra.mxu0 0.0
        %1467 = vmatprep.subr.mxu0 0.0
        %1468 = vmatpush1.msra.mxu0 0.0
        %1469 = vmatprep.subr.mxu0 0.0
        %1470 = vmatpush1.msra.mxu0 0.0
        %1471 = vmatprep.subr.mxu0 0.0
        %1472 = vmatpush1.msra.mxu0 0.0
        %1473 = vmatprep.subr.mxu0 0.0
        %1474 = vmatpush1.msra.mxu0 0.0
        %1475 = vmatprep.subr.mxu0 0.0
        %1476 = vmatpush1.msra.mxu0 0.0
        %1477 = vmatprep.subr.mxu0 0.0
        %1478 = vmatpush1.msra.mxu0 0.0
        %1479 = vmatprep.subr.mxu0 0.0
        %1480 = vmatpush1.msra.mxu0 0.0
        %1481 = vmatprep.subr.mxu0 0.0
        %1482 = vmatpush1.msra.mxu0 0.0
        %1483 = vmatprep.subr.mxu0 0.0
        %1484 = vmatpush1.msra.mxu0 0.0
        %1485 = vmatprep.subr.mxu0 0.0
        %1486 = vmatpush1.msra.mxu0 0.0
        %1487 = vmatprep.subr.mxu0 0.0
        %1488 = vmatpush1.msra.mxu0 0.0
        %1489 = vmatprep.subr.mxu0 0.0
        %1490 = vmatpush1.msra.mxu0 0.0
        %1491 = vmatprep.subr.mxu0 0.0
        %1492 = vmatpush1.msra.mxu0 0.0
        %1493 = vmatprep.subr.mxu0 0.0
        %1494 = vmatpush1.msra.mxu0 0.0
        %1495 = vmatprep.mubr.f32.mxu0 0.0
        %1496 = vmatmul.mubr.f32.gmra.mrb[0].mxu0 %v1426
        %v1497 = vpop.f32.mrb[0].mxu0
        %v1498 = vadd.f32 %v1423, %v1497
        %v1499 = vpop.f32.mrb[0].mxu0
        %1500 = vmatprep.mubr.f32.mxu0 0.0
        %1501 = vmatmul.mubr.f32.gmra.mrb[0].mxu0 %v1429
        %v1502 = vpop.f32.mrb[0].mxu0
        %v1503 = vadd.f32 %v1424, %v1502
        %v1504 = vpop.f32.mrb[0].mxu0
        %1505 = vdwg.mxu0
        %vm1506 = vcmp.ge.f32.partialorder %v1498, 0.0
        %vm1507 = vcmp.ge.f32.partialorder %v1503, 0.0
        %v1508 = vmul.f32 %v1498, 0.01
        %v1509 = vmul.f32 %v1503, 0.01
        %v1510 = vsel %vm1506, %v1498, %v1508
        %v1511 = vsel %vm1507, %v1503, %v1509
        %s1512 = scalar_lea.vmem %s539, 32 [#allocation12]
        %v1513 = vld [vmem:[%s1512] sm:$0xff]
        %v1514 = vld [vmem:[%s1512 + $0x8] sm:$0xff]
        %v1515 = vmul.f32 %v1513, %v1510
        %v1516 = vmul.f32 %v1514, %v1511
        %v1517 = vrot.slane %v1515, 4
        %v1518 = vadd.f32 %v1515, %v1517
        %v1519 = vrot.slane %v1518, 2
        %v1520 = vadd.f32 %v1518, %v1519
        %v1521 = vrot.slane %v1520, 1
        %v1522 = vadd.f32 %v1520, %v1521
        %v1523 = vrot.slane %v1516, 4
        %v1524 = vadd.f32 %v1516, %v1523
        %v1525 = vrot.slane %v1524, 2
        %v1526 = vadd.f32 %v1524, %v1525
        %v1527 = vrot.slane %v1526, 1
        %v1528 = vadd.f32 %v1526, %v1527
        %v1529 = vlaneseq
        %v1530 = vshrl.u32 %v1529, 7
        %v1531 = vsub.s32 3, %v1530
        %v1532 = vrot.slane %v628, %v1531
        %v1533 = vadd.f32 %v1522, %v1532
        %v1534 = vadd.f32 %v1528, %v1532
        %v1535 = vmax.f32 %v1533, 0.0
        %v1536 = vmax.f32 %v1534, 0.0
        %v1537 = vadd.f32 %v1535, 1.49
        %v1538 = vadd.f32 %v1536, 1.49
        %s1539 = sld [smem:[#allocation2]]
        %v1540 = vstv %s1539
        %v1541 = vmul.f32 %v1537, %v1540
        %v1542 = vmul.f32 %v1538, %v1540
        %v1543 = vld [vmem:[%s621] sm:$0x3]
        %v1545 = vrot.slane %v1543, 1
        %v1548 = vadd.f32 %v1541, %v1543
        %v1549 = vadd.f32 %v1542, %v1545
        %v1552 = vrot.slane %v1549, 7
        %vm1553 = vcmask 1041409
        %v1554 = vsel %vm1553, %v1552, %v1548
        %1556 = vst [vmem:[%s613] sm:$0x3] %v1554
        %s1557 = sand.u32 %s300, 1
        %s1558 = scalar_lea.sflag [#allocation5], %s1557
        %s1559 = sand.u32 %s300, 1
        %s1560 = smul.addr %s1559, 2
        %s1561 = scalar_lea.vmem [#allocation14], %s1560
        // Predicated region
        $region85: #{tpu_custom_call.1} parent=59 // pred_check
          %p1562 = pneg %p310
        $region86: #{tpu_custom_call.1} parent=59 // pred_check_branch
          %1564 = sbr.rel (%p1562) target = $region88
        $region87: #{tpu_custom_call.1} parent=59 // pred_region
          %s1566 = ssub.s32 32, 32
          %1567 = vsyncadd %s1558, %s1566
          %s1568 = smul.addr %s37, 32
          %s1569 = scalar_lea.hbm %s10, %s1568
          %s1571 = sshll.u32 %s1561, 4
          %s1572 = int_to_ptr.vmem [resolvable:$true] %s1571
          %1574 = dma.vmem_to_hbm [thread:$0]  %s1572, 32, %s1569, %s1558
        $region88: #{tpu_custom_call.1} parent=59 // pred_fallthru
          _
      $region60: #{tpu_custom_call.1} parent=5 // pred_fallthru
        _
      %p1575 = scmp.le.s32.totalorder 2, %s32
      // Predicated region
      $region89: #{tpu_custom_call.1} parent=5 // pred_check
        %p1576 = pneg %p1575
      $region90: #{tpu_custom_call.1} parent=5 // pred_check_branch
        %1578 = sbr.rel (%p1576) target = $region92
      $region91: #{tpu_custom_call.1} parent=5 // pred_region
        %s1579 = ssub.s32 %s32, 2
        // Predicated region
        $region93: #{tpu_custom_call.1} parent=91 // pred_check
          %p1580 = pneg %p316
        $region94: #{tpu_custom_call.1} parent=91 // pred_check_branch
          %1582 = sbr.rel (%p1580) target = $region96
        $region95: #{tpu_custom_call.1} parent=91 // pred_region
          %s1583 = sand.u32 %s301, 1
          %s1584 = scalar_lea.sflag [#allocation5], %s1583
          %s1585 = sand.u32 %s301, 1
          %s1586 = smul.addr %s1585, 2
          %s1587 = scalar_lea.vmem [#allocation14], %s1586
          %1588 = dma.done %s1584, 32
        $region96: #{tpu_custom_call.1} parent=91 // pred_fallthru
          _
      $region92: #{tpu_custom_call.1} parent=5 // pred_fallthru
        _
    $region6: #{tpu_custom_call.1} parent=1 // loop_footer
      %s36 = sadd.s32 1, %s32
    $region7: #{tpu_custom_call.1} parent=1 // loop_footer_branch
      %31 = sbr.rel target = $region3
    $region8: #{tpu_custom_call.1} parent=1 // loop_exit
      _
    %1589 = vsyncpa [#allocation4], 1
    %s1590 = scalar_lea.sflag [#allocation4], 1
    %1591 = vsyncpa %s1590, 1
    %1592 = vsyncpa [#allocation7], 1
    %s1593 = scalar_lea.sflag [#allocation7], 1
    %1594 = vsyncpa %s1593, 1
    %1595 = vsyncpa [#allocation10], 1
    %s1596 = scalar_lea.sflag [#allocation10], 1
    %1597 = vsyncpa %s1596, 1
    %1598 = vsyncpa [#allocation13], 1
    %s1599 = scalar_lea.sflag [#allocation13], 1
    %1600 = vsyncpa %s1599, 1
    %1601 = vsyncpa [#allocation5], 1
    %s1602 = scalar_lea.sflag [#allocation5], 1
    %1603 = vsyncpa %s1602, 1

</llo_original>
